<compile_context>
chip_gen: v7x
topology: tpu7x:2x2x1
jax: 0.10.0
libtpu: 0.0.40
codegen_flags: <defaults>
</compile_context>

<pallas_src>
import jax
import jax.numpy as jnp
import numpy as np
from jax.experimental import pallas as pl
from jax.experimental.pallas import tpu as pltpu


# ---------------------------------------------------------------------------
# Pallas kernel: whole forward pass in one invocation.
# ---------------------------------------------------------------------------
def _ddrqn_kernel(x_ref, h0_ref, c0_ref,
                  wih_ref, whh_ref, b_ref,
                  w1_ref, b1_ref, w2_ref, b2_ref,
                  q_ref, hn_ref, cn_ref,
                  gx_sc, hs_sc):
    T, Bp, H = hs_sc.shape
    A = q_ref.shape[-1]

    # --- (1) input->hidden projection for ALL time steps in one MXU pass ----
    # x_ref: (T*Bp, F); gates_x = x @ W_ih^T + (b_ih + b_hh)
    gx = jnp.dot(x_ref[...], wih_ref[...],
                 preferred_element_type=jnp.float32) + b_ref[...]
    gx_sc[...] = gx.reshape(T, Bp, 4 * H)

    # --- (2) sequential LSTM recurrence, h/c carried in vregs ----------------
    w_hh = whh_ref[...]                       # hoist weight load out of the loop

    def step(t, carry):
        h, c = carry
        gates = gx_sc[t] + jnp.dot(h, w_hh, preferred_element_type=jnp.float32)
        # Packed gate order is [i, f, o | g]: one contiguous sigmoid, one tanh.
        sig = jax.nn.sigmoid(gates[:, :3 * H])
        i_g = sig[:, 0 * H:1 * H]
        f_g = sig[:, 1 * H:2 * H]
        o_g = sig[:, 2 * H:3 * H]
        g_g = jnp.tanh(gates[:, 3 * H:])
        c_new = f_g * c + i_g * g_g
        h_new = o_g * jnp.tanh(c_new)
        hs_sc[t] = h_new
        return (h_new, c_new)

    h_fin, c_fin = jax.lax.fori_loop(
        0, T, step, (h0_ref[...], c0_ref[...]), unroll=True)
    hn_ref[...] = h_fin.astype(hn_ref.dtype)
    cn_ref[...] = c_fin.astype(cn_ref.dtype)

    # --- (3) fc1 + ReLU + fc2 batched over all (T*Bp) LSTM outputs -----------
    hs = hs_sc[...].reshape(T * Bp, H)
    z = jnp.maximum(
        jnp.dot(hs, w1_ref[...], preferred_element_type=jnp.float32) + b1_ref[...],
        0.0)
    q = jnp.dot(z, w2_ref[...], preferred_element_type=jnp.float32) + b2_ref[...]
    q_ref[...] = q.astype(q_ref.dtype)


# ---------------------------------------------------------------------------
# Wrapper: padding, layout plumbing, pallas_call.
# ---------------------------------------------------------------------------
@jax.jit
def ddrqn_forward(params, state, h0, c0):
    """state: (B, T, F) float32 (batch_first, like nn.LSTM(batch_first=True)).

    Returns (q, (h_n, c_n)) with q: (B, T, A), h_n/c_n: (1, B, H).
    """
    B, T_len, F = state.shape
    H = params["w_hh_t"].shape[0]          # w_hh_t: (H, 4H)
    A = params["w2_t"].shape[1]            # w2_t:   (H, A)

    # Pad batch to the f32 sublane tile (8) so vregs / MXU rows are not masked.
    Bp = ((B + 7) // 8) * 8
    pad_b = Bp - B

    x_tm = jnp.transpose(state, (1, 0, 2)).astype(jnp.float32)   # (T, B, F)
    h0 = h0.astype(jnp.float32)
    c0 = c0.astype(jnp.float32)
    if pad_b:
        x_tm = jnp.pad(x_tm, ((0, 0), (0, pad_b), (0, 0)))
        h0 = jnp.pad(h0, ((0, pad_b), (0, 0)))
        c0 = jnp.pad(c0, ((0, pad_b), (0, 0)))
    x2d = x_tm.reshape(T_len * Bp, F)                            # (T*Bp, F)

    full = lambda shape: pl.BlockSpec(shape, lambda i: (0,) * len(shape))

    grid_spec = pltpu.PrefetchScalarGridSpec(
        num_scalar_prefetch=0,
        grid=(1,),                      # single invocation; time loop is in-kernel
        in_specs=[
            full((T_len * Bp, F)),      # x, time-major, flattened (one DMA)
            full((Bp, H)),              # h0
            full((Bp, H)),              # c0
            full((F, 4 * H)),           # W_ih^T  (gates packed [i,f,o,g])
            full((H, 4 * H)),           # W_hh^T
            full((1, 4 * H)),           # b_ih + b_hh
            full((H, H)),               # W_fc1^T
            full((1, H)),               # b_fc1
            full((H, A)),               # W_fc2^T
            full((1, A)),               # b_fc2
        ],
        out_specs=[
            full((T_len * Bp, A)),      # q (time-major, flattened)
            full((Bp, H)),              # h_n
            full((Bp, H)),              # c_n
        ],
        scratch_shapes=[
            pltpu.VMEM((T_len, Bp, 4 * H), jnp.float32),   # precomputed x-gates
            pltpu.VMEM((T_len, Bp, H), jnp.float32),       # per-step LSTM outputs
        ],
    )

    # TODO(synk): for production sizes add a leading "parallel" batch-grid axis
    # (v7x 2-TC) and bf16 matmul operands; at H~1.5-2k tile W_ih/W_hh over 4H
    # and raise vmem_limit_bytes for v7x's 64 MiB VMEM.
    q2d, h_n, c_n = pl.pallas_call(
        _ddrqn_kernel,
        out_shape=(
            jax.ShapeDtypeStruct((T_len * Bp, A), jnp.float32),
            jax.ShapeDtypeStruct((Bp, H), jnp.float32),
            jax.ShapeDtypeStruct((Bp, H), jnp.float32),
        ),
        grid_spec=grid_spec,
        compiler_params=pltpu.CompilerParams(
            dimension_semantics=("arbitrary",)),
    )(x2d, h0, c0,
      params["w_ih_t"], params["w_hh_t"], params["b_lstm"],
      params["w1_t"], params["b1"], params["w2_t"], params["b2"])

    q = jnp.transpose(q2d.reshape(T_len, Bp, A)[:, :B, :], (1, 0, 2))   # (B, T, A)
    return q, (h_n[:B][None], c_n[:B][None])      # hidden shaped (1, B, H) like PyTorch


# ---------------------------------------------------------------------------
# Parameter init in PyTorch layout + packing for the kernel.
# ---------------------------------------------------------------------------
def init_raw_params(key, input_dims, n_actions, hidden_units):
    """PyTorch-layout parameters (gate order [i, f, g, o] like nn.LSTM)."""
    F = input_dims + n_actions
    H = hidden_units
    A = n_actions
    ks = jax.random.split(key, 8)
    k = 1.0 / np.sqrt(H)
    u = lambda kk, shape: jax.random.uniform(kk, shape, jnp.float32,
                                             minval=-k, maxval=k)
    return {
        "w_ih": u(ks[0], (4 * H, F)),   # weight_ih_l0
        "w_hh": u(ks[1], (4 * H, H)),   # weight_hh_l0
        "b_ih": u(ks[2], (4 * H,)),
        "b_hh": u(ks[3], (4 * H,)),
        "w1": u(ks[4], (H, H)),         # fc1.weight
        "b1": u(ks[5], (H,)),
        "w2": u(ks[6], (A, H)),         # fc2.weight
        "b2": u(ks[7], (A,)),
    }


def _reorder_gates(w, H):
    """PyTorch gate order [i, f, g, o] -> kernel packing [i, f, o, g]."""
    i, f, g, o = w[0 * H:1 * H], w[1 * H:2 * H], w[2 * H:3 * H], w[3 * H:4 * H]
    return jnp.concatenate([i, f, o, g], axis=0)


def pack_params(raw, hidden_units):
    H = hidden_units
    return {
        "w_ih_t": _reorder_gates(raw["w_ih"], H).T,                # (F, 4H)
        "w_hh_t": _reorder_gates(raw["w_hh"], H).T,                # (H, 4H)
        "b_lstm": _reorder_gates(raw["b_ih"] + raw["b_hh"], H)[None, :],  # (1, 4H)
        "w1_t": raw["w1"].T,                                       # (H, H)
        "b1": raw["b1"][None, :],                                  # (1, H)
        "w2_t": raw["w2"].T,                                       # (H, A)
        "b2": raw["b2"][None, :],                                  # (1, A)
    }


# ---------------------------------------------------------------------------
# Pure-JAX reference (PyTorch LSTM semantics, raw weights) for verification.
# ---------------------------------------------------------------------------
def reference_forward(raw, state, h0, c0):
    H = raw["w_hh"].shape[1]
    w_ih_t = raw["w_ih"].T
    w_hh_t = raw["w_hh"].T
    b = (raw["b_ih"] + raw["b_hh"])[None, :]

    def step(carry, x_t):
        h, c = carry
        gates = x_t @ w_ih_t + h @ w_hh_t + b
        i_g = jax.nn.sigmoid(gates[:, 0 * H:1 * H])
        f_g = jax.nn.sigmoid(gates[:, 1 * H:2 * H])
        g_g = jnp.tanh(gates[:, 2 * H:3 * H])
        o_g = jax.nn.sigmoid(gates[:, 3 * H:4 * H])
        c_new = f_g * c + i_g * g_g
        h_new = o_g * jnp.tanh(c_new)
        return (h_new, c_new), h_new

    x_tm = jnp.transpose(state, (1, 0, 2))
    (h_n, c_n), hs = jax.lax.scan(step, (h0, c0), x_tm)
    hs = jnp.transpose(hs, (1, 0, 2))                          # (B, T, H)
    z = jnp.maximum(hs @ raw["w1"].T + raw["b1"][None, :], 0.0)
    q = z @ raw["w2"].T + raw["b2"][None, :]
    return q, (h_n[None], c_n[None])


if __name__ == "__main__":
    # Small shapes consistent with the module (lr / optimizer / loss not part of forward).
    n_actions = 4
    input_dims = 8
    hidden_units = 32
    B, T_len = 2, 8
    F = input_dims + n_actions

    key = jax.random.PRNGKey(0)
    k_param, k_state = jax.random.split(key)
    raw = init_raw_params(k_param, input_dims, n_actions, hidden_units)
    params = pack_params(raw, hidden_units)

    state = jax.random.normal(k_state, (B, T_len, F), jnp.float32)
    h0 = jnp.zeros((B, hidden_units), jnp.float32)   # hidden=None -> zeros
    c0 = jnp.zeros((B, hidden_units), jnp.float32)

    q, (h_n, c_n) = ddrqn_forward(params, state, h0, c0)
    jax.block_until_ready((q, h_n, c_n))

    q_ref, (h_ref, c_ref) = reference_forward(raw, state, h0, c0)
    np.testing.assert_allclose(np.asarray(q), np.asarray(q_ref), rtol=1e-5, atol=1e-5)
    np.testing.assert_allclose(np.asarray(h_n), np.asarray(h_ref), rtol=1e-5, atol=1e-5)
    np.testing.assert_allclose(np.asarray(c_n), np.asarray(c_ref), rtol=1e-5, atol=1e-5)

    assert q.shape == (B, T_len, n_actions)
    assert h_n.shape == (1, B, hidden_units) and c_n.shape == (1, B, hidden_units)
    print("KERNEL_OK")
</pallas_src>

<mosaic_0001>
module attributes {stable_mosaic.version = 11 : i64} {
  func.func @_ddrqn_kernel(%arg0: i32, %arg1: memref<64x12xf32, #tpu.memory_space<vmem>>, %arg2: memref<8x32xf32, #tpu.memory_space<vmem>>, %arg3: memref<8x32xf32, #tpu.memory_space<vmem>>, %arg4: memref<12x128xf32, #tpu.memory_space<vmem>>, %arg5: memref<32x128xf32, #tpu.memory_space<vmem>>, %arg6: memref<1x128xf32, #tpu.memory_space<vmem>>, %arg7: memref<32x32xf32, #tpu.memory_space<vmem>>, %arg8: memref<1x32xf32, #tpu.memory_space<vmem>>, %arg9: memref<32x4xf32, #tpu.memory_space<vmem>>, %arg10: memref<1x4xf32, #tpu.memory_space<vmem>>, %arg11: memref<64x4xf32, #tpu.memory_space<vmem>>, %arg12: memref<8x32xf32, #tpu.memory_space<vmem>>, %arg13: memref<8x32xf32, #tpu.memory_space<vmem>>, %arg14: memref<8x8x128xf32, #tpu.memory_space<vmem>>, %arg15: memref<8x8x32xf32, #tpu.memory_space<vmem>>) attributes {dimension_semantics = [#tpu.dimension_semantics<arbitrary>], iteration_bounds = array<i64: 1>, scalar_prefetch = 0 : i64, scratch_operands = 2 : i64, tpu.core_type = #tpu.core_type<tc>, window_params = [{pipeline_mode = #tpu.pipeline_mode<synchronous>, transform_indices = @transform_0, window_bounds = array<i64: 64, 12>}, {pipeline_mode = #tpu.pipeline_mode<synchronous>, transform_indices = @transform_1, window_bounds = array<i64: 8, 32>}, {pipeline_mode = #tpu.pipeline_mode<synchronous>, transform_indices = @transform_2, window_bounds = array<i64: 8, 32>}, {pipeline_mode = #tpu.pipeline_mode<synchronous>, transform_indices = @transform_3, window_bounds = array<i64: 12, 128>}, {pipeline_mode = #tpu.pipeline_mode<synchronous>, transform_indices = @transform_4, window_bounds = array<i64: 32, 128>}, {pipeline_mode = #tpu.pipeline_mode<synchronous>, transform_indices = @transform_5, window_bounds = array<i64: 1, 128>}, {pipeline_mode = #tpu.pipeline_mode<synchronous>, transform_indices = @transform_6, window_bounds = array<i64: 32, 32>}, {pipeline_mode = #tpu.pipeline_mode<synchronous>, transform_indices = @transform_7, window_bounds = array<i64: 1, 32>}, {pipeline_mode = #tpu.pipeline_mode<synchronous>, transform_indices = @transform_8, window_bounds = array<i64: 32, 4>}, {pipeline_mode = #tpu.pipeline_mode<synchronous>, transform_indices = @transform_9, window_bounds = array<i64: 1, 4>}, {pipeline_mode = #tpu.pipeline_mode<synchronous>, transform_indices = @transform_10, window_bounds = array<i64: 64, 4>}, {pipeline_mode = #tpu.pipeline_mode<synchronous>, transform_indices = @transform_11, window_bounds = array<i64: 8, 32>}, {pipeline_mode = #tpu.pipeline_mode<synchronous>, transform_indices = @transform_12, window_bounds = array<i64: 8, 32>}]} {
    %c0 = arith.constant 0 : index
    %c0_0 = arith.constant 0 : index
    %0 = vector.load %arg1[%c0, %c0_0] : memref<64x12xf32, #tpu.memory_space<vmem>>, vector<64x12xf32>
    %c0_1 = arith.constant 0 : index
    %c0_2 = arith.constant 0 : index
    %1 = vector.load %arg4[%c0_1, %c0_2] : memref<12x128xf32, #tpu.memory_space<vmem>>, vector<12x128xf32>
    %cst = arith.constant dense<0.000000e+00> : vector<64x128xf32>
    %2 = tpu.matmul %0, %1, %cst {dimension_numbers = #tpu.dot_dimension_numbers<[1], [0], [0], [1], [0, 0, 1, 1], [], []>} : vector<64x12xf32>, vector<12x128xf32>, vector<64x128xf32> -> vector<64x128xf32>
    %c0_3 = arith.constant 0 : index
    %c0_4 = arith.constant 0 : index
    %3 = vector.load %arg6[%c0_3, %c0_4] : memref<1x128xf32, #tpu.memory_space<vmem>>, vector<1x128xf32>
    %4 = vector.broadcast %3 : vector<1x128xf32> to vector<64x128xf32>
    %5 = arith.addf %2, %4 : vector<64x128xf32>
    %6 = vector.shape_cast %5 : vector<64x128xf32> to vector<8x8x128xf32>
    %c0_5 = arith.constant 0 : index
    %c0_6 = arith.constant 0 : index
    %c0_7 = arith.constant 0 : index
    %7 = vector.load %arg14[%c0_5, %c0_6, %c0_7] : memref<8x8x128xf32, #tpu.memory_space<vmem>>, vector<8x8x128xf32>
    tpu.vector_store %arg14[%c0_5, %c0_6, %c0_7], %6 {strides = array<i32>} : memref<8x8x128xf32, #tpu.memory_space<vmem>>, vector<8x8x128xf32>,
    %c0_8 = arith.constant 0 : index
    %c0_9 = arith.constant 0 : index
    %8 = vector.load %arg5[%c0_8, %c0_9] : memref<32x128xf32, #tpu.memory_space<vmem>>, vector<32x128xf32>
    %c0_10 = arith.constant 0 : index
    %c0_11 = arith.constant 0 : index
    %9 = vector.load %arg2[%c0_10, %c0_11] : memref<8x32xf32, #tpu.memory_space<vmem>>, vector<8x32xf32>
    %c0_12 = arith.constant 0 : index
    %c0_13 = arith.constant 0 : index
    %10 = vector.load %arg3[%c0_12, %c0_13] : memref<8x32xf32, #tpu.memory_space<vmem>>, vector<8x32xf32>
    %c0_i32 = arith.constant 0 : i32
    %11 = arith.index_cast %c0_i32 : i32 to index
    %c0_14 = arith.constant 0 : index
    %c0_15 = arith.constant 0 : index
    %12 = vector.load %arg14[%11, %c0_14, %c0_15] : memref<8x8x128xf32, #tpu.memory_space<vmem>>, vector<1x8x128xf32>
    %13 = vector.shape_cast %12 : vector<1x8x128xf32> to vector<8x128xf32>
    %cst_16 = arith.constant dense<0.000000e+00> : vector<8x128xf32>
    %14 = tpu.matmul %9, %8, %cst_16 {dimension_numbers = #tpu.dot_dimension_numbers<[1], [0], [0], [1], [0, 0, 1, 1], [], []>} : vector<8x32xf32>, vector<32x128xf32>, vector<8x128xf32> -> vector<8x128xf32>
    %15 = arith.addf %13, %14 : vector<8x128xf32>
    %16 = vector.extract_strided_slice %15 {offsets = [0, 0], sizes = [8, 96], strides = [1, 1]} : vector<8x128xf32> to vector<8x96xf32>
    %17 = arith.negf %16 : vector<8x96xf32>
    %18 = math.exp %17 : vector<8x96xf32>
    %cst_17 = arith.constant 1.000000e+00 : f32
    %19 = vector.broadcast %cst_17 : f32 to vector<8x96xf32>
    %20 = arith.addf %19, %18 : vector<8x96xf32>
    %21 = arith.divf %19, %20 : vector<8x96xf32>
    %22 = vector.extract_strided_slice %21 {offsets = [0, 0], sizes = [8, 32], strides = [1, 1]} : vector<8x96xf32> to vector<8x32xf32>
    %23 = vector.extract_strided_slice %21 {offsets = [0, 32], sizes = [8, 32], strides = [1, 1]} : vector<8x96xf32> to vector<8x32xf32>
    %24 = vector.extract_strided_slice %21 {offsets = [0, 64], sizes = [8, 32], strides = [1, 1]} : vector<8x96xf32> to vector<8x32xf32>
    %25 = vector.extract_strided_slice %15 {offsets = [0, 96], sizes = [8, 32], strides = [1, 1]} : vector<8x128xf32> to vector<8x32xf32>
    %26 = math.tanh %25 : vector<8x32xf32>
    %27 = arith.mulf %23, %10 : vector<8x32xf32>
    %28 = arith.mulf %22, %26 : vector<8x32xf32>
    %29 = arith.addf %27, %28 : vector<8x32xf32>
    %30 = math.tanh %29 : vector<8x32xf32>
    %31 = arith.mulf %24, %30 : vector<8x32xf32>
    %32 = arith.index_cast %c0_i32 : i32 to index
    %c0_18 = arith.constant 0 : index
    %c0_19 = arith.constant 0 : index
    %33 = vector.load %arg15[%32, %c0_18, %c0_19] : memref<8x8x32xf32, #tpu.memory_space<vmem>>, vector<1x8x32xf32>
    %34 = vector.shape_cast %33 : vector<1x8x32xf32> to vector<8x32xf32>
    %35 = vector.shape_cast %31 : vector<8x32xf32> to vector<1x8x32xf32>
    tpu.vector_store %arg15[%32, %c0_18, %c0_19], %35 {strides = array<i32>} : memref<8x8x32xf32, #tpu.memory_space<vmem>>, vector<1x8x32xf32>,
    %c1_i32 = arith.constant 1 : i32
    %36 = arith.index_cast %c1_i32 : i32 to index
    %c0_20 = arith.constant 0 : index
    %c0_21 = arith.constant 0 : index
    %37 = vector.load %arg14[%36, %c0_20, %c0_21] : memref<8x8x128xf32, #tpu.memory_space<vmem>>, vector<1x8x128xf32>
    %38 = vector.shape_cast %37 : vector<1x8x128xf32> to vector<8x128xf32>
    %cst_22 = arith.constant dense<0.000000e+00> : vector<8x128xf32>
    %39 = tpu.matmul %31, %8, %cst_22 {dimension_numbers = #tpu.dot_dimension_numbers<[1], [0], [0], [1], [0, 0, 1, 1], [], []>} : vector<8x32xf32>, vector<32x128xf32>, vector<8x128xf32> -> vector<8x128xf32>
    %40 = arith.addf %38, %39 : vector<8x128xf32>
    %41 = vector.extract_strided_slice %40 {offsets = [0, 0], sizes = [8, 96], strides = [1, 1]} : vector<8x128xf32> to vector<8x96xf32>
    %42 = arith.negf %41 : vector<8x96xf32>
    %43 = math.exp %42 : vector<8x96xf32>
    %cst_23 = arith.constant 1.000000e+00 : f32
    %44 = vector.broadcast %cst_23 : f32 to vector<8x96xf32>
    %45 = arith.addf %44, %43 : vector<8x96xf32>
    %46 = arith.divf %44, %45 : vector<8x96xf32>
    %47 = vector.extract_strided_slice %46 {offsets = [0, 0], sizes = [8, 32], strides = [1, 1]} : vector<8x96xf32> to vector<8x32xf32>
    %48 = vector.extract_strided_slice %46 {offsets = [0, 32], sizes = [8, 32], strides = [1, 1]} : vector<8x96xf32> to vector<8x32xf32>
    %49 = vector.extract_strided_slice %46 {offsets = [0, 64], sizes = [8, 32], strides = [1, 1]} : vector<8x96xf32> to vector<8x32xf32>
    %50 = vector.extract_strided_slice %40 {offsets = [0, 96], sizes = [8, 32], strides = [1, 1]} : vector<8x128xf32> to vector<8x32xf32>
    %51 = math.tanh %50 : vector<8x32xf32>
    %52 = arith.mulf %48, %29 : vector<8x32xf32>
    %53 = arith.mulf %47, %51 : vector<8x32xf32>
    %54 = arith.addf %52, %53 : vector<8x32xf32>
    %55 = math.tanh %54 : vector<8x32xf32>
    %56 = arith.mulf %49, %55 : vector<8x32xf32>
    %57 = arith.index_cast %c1_i32 : i32 to index
    %c0_24 = arith.constant 0 : index
    %c0_25 = arith.constant 0 : index
    %58 = vector.load %arg15[%57, %c0_24, %c0_25] : memref<8x8x32xf32, #tpu.memory_space<vmem>>, vector<1x8x32xf32>
    %59 = vector.shape_cast %58 : vector<1x8x32xf32> to vector<8x32xf32>
    %60 = vector.shape_cast %56 : vector<8x32xf32> to vector<1x8x32xf32>
    tpu.vector_store %arg15[%57, %c0_24, %c0_25], %60 {strides = array<i32>} : memref<8x8x32xf32, #tpu.memory_space<vmem>>, vector<1x8x32xf32>,
    %c2_i32 = arith.constant 2 : i32
    %61 = arith.index_cast %c2_i32 : i32 to index
    %c0_26 = arith.constant 0 : index
    %c0_27 = arith.constant 0 : index
    %62 = vector.load %arg14[%61, %c0_26, %c0_27] : memref<8x8x128xf32, #tpu.memory_space<vmem>>, vector<1x8x128xf32>
    %63 = vector.shape_cast %62 : vector<1x8x128xf32> to vector<8x128xf32>
    %cst_28 = arith.constant dense<0.000000e+00> : vector<8x128xf32>
    %64 = tpu.matmul %56, %8, %cst_28 {dimension_numbers = #tpu.dot_dimension_numbers<[1], [0], [0], [1], [0, 0, 1, 1], [], []>} : vector<8x32xf32>, vector<32x128xf32>, vector<8x128xf32> -> vector<8x128xf32>
    %65 = arith.addf %63, %64 : vector<8x128xf32>
    %66 = vector.extract_strided_slice %65 {offsets = [0, 0], sizes = [8, 96], strides = [1, 1]} : vector<8x128xf32> to vector<8x96xf32>
    %67 = arith.negf %66 : vector<8x96xf32>
    %68 = math.exp %67 : vector<8x96xf32>
    %cst_29 = arith.constant 1.000000e+00 : f32
    %69 = vector.broadcast %cst_29 : f32 to vector<8x96xf32>
    %70 = arith.addf %69, %68 : vector<8x96xf32>
    %71 = arith.divf %69, %70 : vector<8x96xf32>
    %72 = vector.extract_strided_slice %71 {offsets = [0, 0], sizes = [8, 32], strides = [1, 1]} : vector<8x96xf32> to vector<8x32xf32>
    %73 = vector.extract_strided_slice %71 {offsets = [0, 32], sizes = [8, 32], strides = [1, 1]} : vector<8x96xf32> to vector<8x32xf32>
    %74 = vector.extract_strided_slice %71 {offsets = [0, 64], sizes = [8, 32], strides = [1, 1]} : vector<8x96xf32> to vector<8x32xf32>
    %75 = vector.extract_strided_slice %65 {offsets = [0, 96], sizes = [8, 32], strides = [1, 1]} : vector<8x128xf32> to vector<8x32xf32>
    %76 = math.tanh %75 : vector<8x32xf32>
    %77 = arith.mulf %73, %54 : vector<8x32xf32>
    %78 = arith.mulf %72, %76 : vector<8x32xf32>
    %79 = arith.addf %77, %78 : vector<8x32xf32>
    %80 = math.tanh %79 : vector<8x32xf32>
    %81 = arith.mulf %74, %80 : vector<8x32xf32>
    %82 = arith.index_cast %c2_i32 : i32 to index
    %c0_30 = arith.constant 0 : index
    %c0_31 = arith.constant 0 : index
    %83 = vector.load %arg15[%82, %c0_30, %c0_31] : memref<8x8x32xf32, #tpu.memory_space<vmem>>, vector<1x8x32xf32>
    %84 = vector.shape_cast %83 : vector<1x8x32xf32> to vector<8x32xf32>
    %85 = vector.shape_cast %81 : vector<8x32xf32> to vector<1x8x32xf32>
    tpu.vector_store %arg15[%82, %c0_30, %c0_31], %85 {strides = array<i32>} : memref<8x8x32xf32, #tpu.memory_space<vmem>>, vector<1x8x32xf32>,
    %c3_i32 = arith.constant 3 : i32
    %86 = arith.index_cast %c3_i32 : i32 to index
    %c0_32 = arith.constant 0 : index
    %c0_33 = arith.constant 0 : index
    %87 = vector.load %arg14[%86, %c0_32, %c0_33] : memref<8x8x128xf32, #tpu.memory_space<vmem>>, vector<1x8x128xf32>
    %88 = vector.shape_cast %87 : vector<1x8x128xf32> to vector<8x128xf32>
    %cst_34 = arith.constant dense<0.000000e+00> : vector<8x128xf32>
    %89 = tpu.matmul %81, %8, %cst_34 {dimension_numbers = #tpu.dot_dimension_numbers<[1], [0], [0], [1], [0, 0, 1, 1], [], []>} : vector<8x32xf32>, vector<32x128xf32>, vector<8x128xf32> -> vector<8x128xf32>
    %90 = arith.addf %88, %89 : vector<8x128xf32>
    %91 = vector.extract_strided_slice %90 {offsets = [0, 0], sizes = [8, 96], strides = [1, 1]} : vector<8x128xf32> to vector<8x96xf32>
    %92 = arith.negf %91 : vector<8x96xf32>
    %93 = math.exp %92 : vector<8x96xf32>
    %cst_35 = arith.constant 1.000000e+00 : f32
    %94 = vector.broadcast %cst_35 : f32 to vector<8x96xf32>
    %95 = arith.addf %94, %93 : vector<8x96xf32>
    %96 = arith.divf %94, %95 : vector<8x96xf32>
    %97 = vector.extract_strided_slice %96 {offsets = [0, 0], sizes = [8, 32], strides = [1, 1]} : vector<8x96xf32> to vector<8x32xf32>
    %98 = vector.extract_strided_slice %96 {offsets = [0, 32], sizes = [8, 32], strides = [1, 1]} : vector<8x96xf32> to vector<8x32xf32>
    %99 = vector.extract_strided_slice %96 {offsets = [0, 64], sizes = [8, 32], strides = [1, 1]} : vector<8x96xf32> to vector<8x32xf32>
    %100 = vector.extract_strided_slice %90 {offsets = [0, 96], sizes = [8, 32], strides = [1, 1]} : vector<8x128xf32> to vector<8x32xf32>
    %101 = math.tanh %100 : vector<8x32xf32>
    %102 = arith.mulf %98, %79 : vector<8x32xf32>
    %103 = arith.mulf %97, %101 : vector<8x32xf32>
    %104 = arith.addf %102, %103 : vector<8x32xf32>
    %105 = math.tanh %104 : vector<8x32xf32>
    %106 = arith.mulf %99, %105 : vector<8x32xf32>
    %107 = arith.index_cast %c3_i32 : i32 to index
    %c0_36 = arith.constant 0 : index
    %c0_37 = arith.constant 0 : index
    %108 = vector.load %arg15[%107, %c0_36, %c0_37] : memref<8x8x32xf32, #tpu.memory_space<vmem>>, vector<1x8x32xf32>
    %109 = vector.shape_cast %108 : vector<1x8x32xf32> to vector<8x32xf32>
    %110 = vector.shape_cast %106 : vector<8x32xf32> to vector<1x8x32xf32>
    tpu.vector_store %arg15[%107, %c0_36, %c0_37], %110 {strides = array<i32>} : memref<8x8x32xf32, #tpu.memory_space<vmem>>, vector<1x8x32xf32>,
    %c4_i32 = arith.constant 4 : i32
    %111 = arith.index_cast %c4_i32 : i32 to index
    %c0_38 = arith.constant 0 : index
    %c0_39 = arith.constant 0 : index
    %112 = vector.load %arg14[%111, %c0_38, %c0_39] : memref<8x8x128xf32, #tpu.memory_space<vmem>>, vector<1x8x128xf32>
    %113 = vector.shape_cast %112 : vector<1x8x128xf32> to vector<8x128xf32>
    %cst_40 = arith.constant dense<0.000000e+00> : vector<8x128xf32>
    %114 = tpu.matmul %106, %8, %cst_40 {dimension_numbers = #tpu.dot_dimension_numbers<[1], [0], [0], [1], [0, 0, 1, 1], [], []>} : vector<8x32xf32>, vector<32x128xf32>, vector<8x128xf32> -> vector<8x128xf32>
    %115 = arith.addf %113, %114 : vector<8x128xf32>
    %116 = vector.extract_strided_slice %115 {offsets = [0, 0], sizes = [8, 96], strides = [1, 1]} : vector<8x128xf32> to vector<8x96xf32>
    %117 = arith.negf %116 : vector<8x96xf32>
    %118 = math.exp %117 : vector<8x96xf32>
    %cst_41 = arith.constant 1.000000e+00 : f32
    %119 = vector.broadcast %cst_41 : f32 to vector<8x96xf32>
    %120 = arith.addf %119, %118 : vector<8x96xf32>
    %121 = arith.divf %119, %120 : vector<8x96xf32>
    %122 = vector.extract_strided_slice %121 {offsets = [0, 0], sizes = [8, 32], strides = [1, 1]} : vector<8x96xf32> to vector<8x32xf32>
    %123 = vector.extract_strided_slice %121 {offsets = [0, 32], sizes = [8, 32], strides = [1, 1]} : vector<8x96xf32> to vector<8x32xf32>
    %124 = vector.extract_strided_slice %121 {offsets = [0, 64], sizes = [8, 32], strides = [1, 1]} : vector<8x96xf32> to vector<8x32xf32>
    %125 = vector.extract_strided_slice %115 {offsets = [0, 96], sizes = [8, 32], strides = [1, 1]} : vector<8x128xf32> to vector<8x32xf32>
    %126 = math.tanh %125 : vector<8x32xf32>
    %127 = arith.mulf %123, %104 : vector<8x32xf32>
    %128 = arith.mulf %122, %126 : vector<8x32xf32>
    %129 = arith.addf %127, %128 : vector<8x32xf32>
    %130 = math.tanh %129 : vector<8x32xf32>
    %131 = arith.mulf %124, %130 : vector<8x32xf32>
    %132 = arith.index_cast %c4_i32 : i32 to index
    %c0_42 = arith.constant 0 : index
    %c0_43 = arith.constant 0 : index
    %133 = vector.load %arg15[%132, %c0_42, %c0_43] : memref<8x8x32xf32, #tpu.memory_space<vmem>>, vector<1x8x32xf32>
    %134 = vector.shape_cast %133 : vector<1x8x32xf32> to vector<8x32xf32>
    %135 = vector.shape_cast %131 : vector<8x32xf32> to vector<1x8x32xf32>
    tpu.vector_store %arg15[%132, %c0_42, %c0_43], %135 {strides = array<i32>} : memref<8x8x32xf32, #tpu.memory_space<vmem>>, vector<1x8x32xf32>,
    %c5_i32 = arith.constant 5 : i32
    %136 = arith.index_cast %c5_i32 : i32 to index
    %c0_44 = arith.constant 0 : index
    %c0_45 = arith.constant 0 : index
    %137 = vector.load %arg14[%136, %c0_44, %c0_45] : memref<8x8x128xf32, #tpu.memory_space<vmem>>, vector<1x8x128xf32>
    %138 = vector.shape_cast %137 : vector<1x8x128xf32> to vector<8x128xf32>
    %cst_46 = arith.constant dense<0.000000e+00> : vector<8x128xf32>
    %139 = tpu.matmul %131, %8, %cst_46 {dimension_numbers = #tpu.dot_dimension_numbers<[1], [0], [0], [1], [0, 0, 1, 1], [], []>} : vector<8x32xf32>, vector<32x128xf32>, vector<8x128xf32> -> vector<8x128xf32>
    %140 = arith.addf %138, %139 : vector<8x128xf32>
    %141 = vector.extract_strided_slice %140 {offsets = [0, 0], sizes = [8, 96], strides = [1, 1]} : vector<8x128xf32> to vector<8x96xf32>
    %142 = arith.negf %141 : vector<8x96xf32>
    %143 = math.exp %142 : vector<8x96xf32>
    %cst_47 = arith.constant 1.000000e+00 : f32
    %144 = vector.broadcast %cst_47 : f32 to vector<8x96xf32>
    %145 = arith.addf %144, %143 : vector<8x96xf32>
    %146 = arith.divf %144, %145 : vector<8x96xf32>
    %147 = vector.extract_strided_slice %146 {offsets = [0, 0], sizes = [8, 32], strides = [1, 1]} : vector<8x96xf32> to vector<8x32xf32>
    %148 = vector.extract_strided_slice %146 {offsets = [0, 32], sizes = [8, 32], strides = [1, 1]} : vector<8x96xf32> to vector<8x32xf32>
    %149 = vector.extract_strided_slice %146 {offsets = [0, 64], sizes = [8, 32], strides = [1, 1]} : vector<8x96xf32> to vector<8x32xf32>
    %150 = vector.extract_strided_slice %140 {offsets = [0, 96], sizes = [8, 32], strides = [1, 1]} : vector<8x128xf32> to vector<8x32xf32>
    %151 = math.tanh %150 : vector<8x32xf32>
    %152 = arith.mulf %148, %129 : vector<8x32xf32>
    %153 = arith.mulf %147, %151 : vector<8x32xf32>
    %154 = arith.addf %152, %153 : vector<8x32xf32>
    %155 = math.tanh %154 : vector<8x32xf32>
    %156 = arith.mulf %149, %155 : vector<8x32xf32>
    %157 = arith.index_cast %c5_i32 : i32 to index
    %c0_48 = arith.constant 0 : index
    %c0_49 = arith.constant 0 : index
    %158 = vector.load %arg15[%157, %c0_48, %c0_49] : memref<8x8x32xf32, #tpu.memory_space<vmem>>, vector<1x8x32xf32>
    %159 = vector.shape_cast %158 : vector<1x8x32xf32> to vector<8x32xf32>
    %160 = vector.shape_cast %156 : vector<8x32xf32> to vector<1x8x32xf32>
    tpu.vector_store %arg15[%157, %c0_48, %c0_49], %160 {strides = array<i32>} : memref<8x8x32xf32, #tpu.memory_space<vmem>>, vector<1x8x32xf32>,
    %c6_i32 = arith.constant 6 : i32
    %161 = arith.index_cast %c6_i32 : i32 to index
    %c0_50 = arith.constant 0 : index
    %c0_51 = arith.constant 0 : index
    %162 = vector.load %arg14[%161, %c0_50, %c0_51] : memref<8x8x128xf32, #tpu.memory_space<vmem>>, vector<1x8x128xf32>
    %163 = vector.shape_cast %162 : vector<1x8x128xf32> to vector<8x128xf32>
    %cst_52 = arith.constant dense<0.000000e+00> : vector<8x128xf32>
    %164 = tpu.matmul %156, %8, %cst_52 {dimension_numbers = #tpu.dot_dimension_numbers<[1], [0], [0], [1], [0, 0, 1, 1], [], []>} : vector<8x32xf32>, vector<32x128xf32>, vector<8x128xf32> -> vector<8x128xf32>
    %165 = arith.addf %163, %164 : vector<8x128xf32>
    %166 = vector.extract_strided_slice %165 {offsets = [0, 0], sizes = [8, 96], strides = [1, 1]} : vector<8x128xf32> to vector<8x96xf32>
    %167 = arith.negf %166 : vector<8x96xf32>
    %168 = math.exp %167 : vector<8x96xf32>
    %cst_53 = arith.constant 1.000000e+00 : f32
    %169 = vector.broadcast %cst_53 : f32 to vector<8x96xf32>
    %170 = arith.addf %169, %168 : vector<8x96xf32>
    %171 = arith.divf %169, %170 : vector<8x96xf32>
    %172 = vector.extract_strided_slice %171 {offsets = [0, 0], sizes = [8, 32], strides = [1, 1]} : vector<8x96xf32> to vector<8x32xf32>
    %173 = vector.extract_strided_slice %171 {offsets = [0, 32], sizes = [8, 32], strides = [1, 1]} : vector<8x96xf32> to vector<8x32xf32>
    %174 = vector.extract_strided_slice %171 {offsets = [0, 64], sizes = [8, 32], strides = [1, 1]} : vector<8x96xf32> to vector<8x32xf32>
    %175 = vector.extract_strided_slice %165 {offsets = [0, 96], sizes = [8, 32], strides = [1, 1]} : vector<8x128xf32> to vector<8x32xf32>
    %176 = math.tanh %175 : vector<8x32xf32>
    %177 = arith.mulf %173, %154 : vector<8x32xf32>
    %178 = arith.mulf %172, %176 : vector<8x32xf32>
    %179 = arith.addf %177, %178 : vector<8x32xf32>
    %180 = math.tanh %179 : vector<8x32xf32>
    %181 = arith.mulf %174, %180 : vector<8x32xf32>
    %182 = arith.index_cast %c6_i32 : i32 to index
    %c0_54 = arith.constant 0 : index
    %c0_55 = arith.constant 0 : index
    %183 = vector.load %arg15[%182, %c0_54, %c0_55] : memref<8x8x32xf32, #tpu.memory_space<vmem>>, vector<1x8x32xf32>
    %184 = vector.shape_cast %183 : vector<1x8x32xf32> to vector<8x32xf32>
    %185 = vector.shape_cast %181 : vector<8x32xf32> to vector<1x8x32xf32>
    tpu.vector_store %arg15[%182, %c0_54, %c0_55], %185 {strides = array<i32>} : memref<8x8x32xf32, #tpu.memory_space<vmem>>, vector<1x8x32xf32>,
    %c7_i32 = arith.constant 7 : i32
    %186 = arith.index_cast %c7_i32 : i32 to index
    %c0_56 = arith.constant 0 : index
    %c0_57 = arith.constant 0 : index
    %187 = vector.load %arg14[%186, %c0_56, %c0_57] : memref<8x8x128xf32, #tpu.memory_space<vmem>>, vector<1x8x128xf32>
    %188 = vector.shape_cast %187 : vector<1x8x128xf32> to vector<8x128xf32>
    %cst_58 = arith.constant dense<0.000000e+00> : vector<8x128xf32>
    %189 = tpu.matmul %181, %8, %cst_58 {dimension_numbers = #tpu.dot_dimension_numbers<[1], [0], [0], [1], [0, 0, 1, 1], [], []>} : vector<8x32xf32>, vector<32x128xf32>, vector<8x128xf32> -> vector<8x128xf32>
    %190 = arith.addf %188, %189 : vector<8x128xf32>
    %191 = vector.extract_strided_slice %190 {offsets = [0, 0], sizes = [8, 96], strides = [1, 1]} : vector<8x128xf32> to vector<8x96xf32>
    %192 = arith.negf %191 : vector<8x96xf32>
    %193 = math.exp %192 : vector<8x96xf32>
    %cst_59 = arith.constant 1.000000e+00 : f32
    %194 = vector.broadcast %cst_59 : f32 to vector<8x96xf32>
    %195 = arith.addf %194, %193 : vector<8x96xf32>
    %196 = arith.divf %194, %195 : vector<8x96xf32>
    %197 = vector.extract_strided_slice %196 {offsets = [0, 0], sizes = [8, 32], strides = [1, 1]} : vector<8x96xf32> to vector<8x32xf32>
    %198 = vector.extract_strided_slice %196 {offsets = [0, 32], sizes = [8, 32], strides = [1, 1]} : vector<8x96xf32> to vector<8x32xf32>
    %199 = vector.extract_strided_slice %196 {offsets = [0, 64], sizes = [8, 32], strides = [1, 1]} : vector<8x96xf32> to vector<8x32xf32>
    %200 = vector.extract_strided_slice %190 {offsets = [0, 96], sizes = [8, 32], strides = [1, 1]} : vector<8x128xf32> to vector<8x32xf32>
    %201 = math.tanh %200 : vector<8x32xf32>
    %202 = arith.mulf %198, %179 : vector<8x32xf32>
    %203 = arith.mulf %197, %201 : vector<8x32xf32>
    %204 = arith.addf %202, %203 : vector<8x32xf32>
    %205 = math.tanh %204 : vector<8x32xf32>
    %206 = arith.mulf %199, %205 : vector<8x32xf32>
    %207 = arith.index_cast %c7_i32 : i32 to index
    %c0_60 = arith.constant 0 : index
    %c0_61 = arith.constant 0 : index
    %208 = vector.load %arg15[%207, %c0_60, %c0_61] : memref<8x8x32xf32, #tpu.memory_space<vmem>>, vector<1x8x32xf32>
    %209 = vector.shape_cast %208 : vector<1x8x32xf32> to vector<8x32xf32>
    %210 = vector.shape_cast %206 : vector<8x32xf32> to vector<1x8x32xf32>
    tpu.vector_store %arg15[%207, %c0_60, %c0_61], %210 {strides = array<i32>} : memref<8x8x32xf32, #tpu.memory_space<vmem>>, vector<1x8x32xf32>,
    %c8_i32 = arith.constant 8 : i32
    %c0_62 = arith.constant 0 : index
    %c0_63 = arith.constant 0 : index
    %211 = vector.load %arg12[%c0_62, %c0_63] : memref<8x32xf32, #tpu.memory_space<vmem>>, vector<8x32xf32>
    tpu.vector_store %arg12[%c0_62, %c0_63], %206 {strides = array<i32>} : memref<8x32xf32, #tpu.memory_space<vmem>>, vector<8x32xf32>,
    %c0_64 = arith.constant 0 : index
    %c0_65 = arith.constant 0 : index
    %212 = vector.load %arg13[%c0_64, %c0_65] : memref<8x32xf32, #tpu.memory_space<vmem>>, vector<8x32xf32>
    tpu.vector_store %arg13[%c0_64, %c0_65], %204 {strides = array<i32>} : memref<8x32xf32, #tpu.memory_space<vmem>>, vector<8x32xf32>,
    %c0_66 = arith.constant 0 : index
    %c0_67 = arith.constant 0 : index
    %c0_68 = arith.constant 0 : index
    %213 = vector.load %arg15[%c0_66, %c0_67, %c0_68] : memref<8x8x32xf32, #tpu.memory_space<vmem>>, vector<8x8x32xf32>
    %214 = vector.shape_cast %213 : vector<8x8x32xf32> to vector<64x32xf32>
    %c0_69 = arith.constant 0 : index
    %c0_70 = arith.constant 0 : index
    %215 = vector.load %arg7[%c0_69, %c0_70] : memref<32x32xf32, #tpu.memory_space<vmem>>, vector<32x32xf32>
    %cst_71 = arith.constant dense<0.000000e+00> : vector<64x32xf32>
    %216 = tpu.matmul %214, %215, %cst_71 {dimension_numbers = #tpu.dot_dimension_numbers<[1], [0], [0], [1], [0, 0, 1, 1], [], []>} : vector<64x32xf32>, vector<32x32xf32>, vector<64x32xf32> -> vector<64x32xf32>
    %c0_72 = arith.constant 0 : index
    %c0_73 = arith.constant 0 : index
    %217 = vector.load %arg8[%c0_72, %c0_73] : memref<1x32xf32, #tpu.memory_space<vmem>>, vector<1x32xf32>
    %218 = vector.broadcast %217 : vector<1x32xf32> to vector<64x32xf32>
    %219 = arith.addf %216, %218 : vector<64x32xf32>
    %cst_74 = arith.constant 0.000000e+00 : f32
    %220 = vector.broadcast %cst_74 : f32 to vector<64x32xf32>
    %221 = arith.maximumf %219, %220 : vector<64x32xf32>
    %c0_75 = arith.constant 0 : index
    %c0_76 = arith.constant 0 : index
    %222 = vector.load %arg9[%c0_75, %c0_76] : memref<32x4xf32, #tpu.memory_space<vmem>>, vector<32x4xf32>
    %cst_77 = arith.constant dense<0.000000e+00> : vector<64x4xf32>
    %223 = tpu.matmul %221, %222, %cst_77 {dimension_numbers = #tpu.dot_dimension_numbers<[1], [0], [0], [1], [0, 0, 1, 1], [], []>} : vector<64x32xf32>, vector<32x4xf32>, vector<64x4xf32> -> vector<64x4xf32>
    %c0_78 = arith.constant 0 : index
    %c0_79 = arith.constant 0 : index
    %224 = vector.load %arg10[%c0_78, %c0_79] : memref<1x4xf32, #tpu.memory_space<vmem>>, vector<1x4xf32>
    %225 = vector.broadcast %224 : vector<1x4xf32> to vector<64x4xf32>
    %226 = arith.addf %223, %225 : vector<64x4xf32>
    %c0_80 = arith.constant 0 : index
    %c0_81 = arith.constant 0 : index
    %227 = vector.load %arg11[%c0_80, %c0_81] : memref<64x4xf32, #tpu.memory_space<vmem>>, vector<64x4xf32>
    tpu.vector_store %arg11[%c0_80, %c0_81], %226 {strides = array<i32>} : memref<64x4xf32, #tpu.memory_space<vmem>>, vector<64x4xf32>,
    return
  }
  func.func @transform_0(%arg0: i32) -> (i32, i32) {
    %c0_i32 = arith.constant 0 : i32
    %c0_i32_0 = arith.constant 0 : i32
    %c0_i32_1 = arith.constant 0 : i32
    return %c0_i32, %c0_i32_0 : i32, i32
  }
  func.func @transform_1(%arg0: i32) -> (i32, i32) {
    %c0_i32 = arith.constant 0 : i32
    %c0_i32_0 = arith.constant 0 : i32
    %c0_i32_1 = arith.constant 0 : i32
    return %c0_i32, %c0_i32_0 : i32, i32
  }
  func.func @transform_2(%arg0: i32) -> (i32, i32) {
    %c0_i32 = arith.constant 0 : i32
    %c0_i32_0 = arith.constant 0 : i32
    %c0_i32_1 = arith.constant 0 : i32
    return %c0_i32, %c0_i32_0 : i32, i32
  }
  func.func @transform_3(%arg0: i32) -> (i32, i32) {
    %c0_i32 = arith.constant 0 : i32
    %c0_i32_0 = arith.constant 0 : i32
    %c0_i32_1 = arith.constant 0 : i32
    return %c0_i32, %c0_i32_0 : i32, i32
  }
  func.func @transform_4(%arg0: i32) -> (i32, i32) {
    %c0_i32 = arith.constant 0 : i32
    %c0_i32_0 = arith.constant 0 : i32
    %c0_i32_1 = arith.constant 0 : i32
    return %c0_i32, %c0_i32_0 : i32, i32
  }
  func.func @transform_5(%arg0: i32) -> (i32, i32) {
    %c0_i32 = arith.constant 0 : i32
    %c0_i32_0 = arith.constant 0 : i32
    %c0_i32_1 = arith.constant 0 : i32
    return %c0_i32, %c0_i32_0 : i32, i32
  }
  func.func @transform_6(%arg0: i32) -> (i32, i32) {
    %c0_i32 = arith.constant 0 : i32
    %c0_i32_0 = arith.constant 0 : i32
    %c0_i32_1 = arith.constant 0 : i32
    return %c0_i32, %c0_i32_0 : i32, i32
  }
  func.func @transform_7(%arg0: i32) -> (i32, i32) {
    %c0_i32 = arith.constant 0 : i32
    %c0_i32_0 = arith.constant 0 : i32
    %c0_i32_1 = arith.constant 0 : i32
    return %c0_i32, %c0_i32_0 : i32, i32
  }
  func.func @transform_8(%arg0: i32) -> (i32, i32) {
    %c0_i32 = arith.constant 0 : i32
    %c0_i32_0 = arith.constant 0 : i32
    %c0_i32_1 = arith.constant 0 : i32
    return %c0_i32, %c0_i32_0 : i32, i32
  }
  func.func @transform_9(%arg0: i32) -> (i32, i32) {
    %c0_i32 = arith.constant 0 : i32
    %c0_i32_0 = arith.constant 0 : i32
    %c0_i32_1 = arith.constant 0 : i32
    return %c0_i32, %c0_i32_0 : i32, i32
  }
  func.func @transform_10(%arg0: i32) -> (i32, i32) {
    %c0_i32 = arith.constant 0 : i32
    %c0_i32_0 = arith.constant 0 : i32
    %c0_i32_1 = arith.constant 0 : i32
    return %c0_i32, %c0_i32_0 : i32, i32
  }
  func.func @transform_11(%arg0: i32) -> (i32, i32) {
    %c0_i32 = arith.constant 0 : i32
    %c0_i32_0 = arith.constant 0 : i32
    %c0_i32_1 = arith.constant 0 : i32
    return %c0_i32, %c0_i32_0 : i32, i32
  }
  func.func @transform_12(%arg0: i32) -> (i32, i32) {
    %c0_i32 = arith.constant 0 : i32
    %c0_i32_0 = arith.constant 0 : i32
    %c0_i32_1 = arith.constant 0 : i32
    return %c0_i32, %c0_i32_0 : i32, i32
  }
}

</mosaic_0001>

<llo_original>
// kernel: ddrqn_forward.1
$region0: #{ddrqn_forward.1}
  #allocation0 [shape = 'u32[]', space=smem, size = 0x4, offset = 0x4, fixed_abs, tag = 'smem constant byte address 0x4 - core index']
  #allocation1 [shape = 'u32[144,128]{1,0:T(1,128)}', space=vmem, size = 0x12000, scoped, tag = 'internal scratch']
  #allocation2 [shape = 'f32[8,8,128]{2,1,0:T(8,128)}', space=vmem, size = 0x8000, scoped, tag = 'scratch operand']
  #allocation3 [shape = 'f32[8,8,32]{2,1,0:T(8,128)}', space=vmem, size = 0x8000, scoped, tag = 'scratch operand']
  %s0 = inlined_call_operand.vmem [shape: f32[64,12], index: 0, kind: input, shape index: {}]
  %s1 = inlined_call_operand.vmem [shape: f32[8,32], index: 1, kind: input, shape index: {}]
  %s2 = inlined_call_operand.vmem [shape: f32[8,32], index: 2, kind: input, shape index: {}]
  %s3 = inlined_call_operand.vmem [shape: f32[12,128], index: 3, kind: input, shape index: {}]
  %s4 = inlined_call_operand.vmem [shape: f32[32,128], index: 4, kind: input, shape index: {}]
  %s5 = inlined_call_operand.vmem [shape: f32[1,128], index: 5, kind: input, shape index: {}]
  %s6 = inlined_call_operand.vmem [shape: f32[32,32], index: 6, kind: input, shape index: {}]
  %s7 = inlined_call_operand.vmem [shape: f32[1,32], index: 7, kind: input, shape index: {}]
  %s8 = inlined_call_operand.vmem [shape: f32[32,4], index: 8, kind: input, shape index: {}]
  %s9 = inlined_call_operand.vmem [shape: f32[1,4], index: 9, kind: input, shape index: {}]
  %s10 = inlined_call_operand.vmem [shape: f32[64,4], index: 10, kind: output, shape index: {0}]
  %s11 = inlined_call_operand.vmem [shape: f32[8,32], index: 11, kind: output, shape index: {1}]
  %s12 = inlined_call_operand.vmem [shape: f32[8,32], index: 12, kind: output, shape index: {2}]
  %13 = xla_tuple %s10, %s11, %s12
  %s14 = sld [smem:[#allocation0]]
  $region66: #{ddrqn_forward.1} parent=0
    _
  %s16 = ssub.s32 1, %s14
  %s17 = scalar_select 0, %s16, %s14
  // Predicated region
  $region2: #{ddrqn_forward.1} parent=0 // pred_check
    _
  $region3: #{ddrqn_forward.1} parent=0 // pred_check_branch
    %19 = sbr.rel (0) target = $region5
  $region4: #{ddrqn_forward.1} parent=0 // pred_region
    _
  $region5: #{ddrqn_forward.1} parent=0 // pred_fallthru
    _
  // Predicated region
  $region6: #{ddrqn_forward.1} parent=0 // pred_check
    _
  $region7: #{ddrqn_forward.1} parent=0 // pred_check_branch
    %21 = sbr.rel (0) target = $region9
  $region8: #{ddrqn_forward.1} parent=0 // pred_region
    _
  $region9: #{ddrqn_forward.1} parent=0 // pred_fallthru
    _
  // Predicated region
  $region10: #{ddrqn_forward.1} parent=0 // pred_check
    _
  $region11: #{ddrqn_forward.1} parent=0 // pred_check_branch
    %23 = sbr.rel (0) target = $region13
  $region12: #{ddrqn_forward.1} parent=0 // pred_region
    _
  $region13: #{ddrqn_forward.1} parent=0 // pred_fallthru
    _
  // Predicated region
  $region14: #{ddrqn_forward.1} parent=0 // pred_check
    _
  $region15: #{ddrqn_forward.1} parent=0 // pred_check_branch
    %25 = sbr.rel (0) target = $region17
  $region16: #{ddrqn_forward.1} parent=0 // pred_region
    _
  $region17: #{ddrqn_forward.1} parent=0 // pred_fallthru
    _
  // Predicated region
  $region18: #{ddrqn_forward.1} parent=0 // pred_check
    _
  $region19: #{ddrqn_forward.1} parent=0 // pred_check_branch
    %27 = sbr.rel (0) target = $region21
  $region20: #{ddrqn_forward.1} parent=0 // pred_region
    _
  $region21: #{ddrqn_forward.1} parent=0 // pred_fallthru
    _
  // Predicated region
  $region22: #{ddrqn_forward.1} parent=0 // pred_check
    _
  $region23: #{ddrqn_forward.1} parent=0 // pred_check_branch
    %29 = sbr.rel (0) target = $region25
  $region24: #{ddrqn_forward.1} parent=0 // pred_region
    _
  $region25: #{ddrqn_forward.1} parent=0 // pred_fallthru
    _
  // Predicated region
  $region26: #{ddrqn_forward.1} parent=0 // pred_check
    _
  $region27: #{ddrqn_forward.1} parent=0 // pred_check_branch
    %31 = sbr.rel (0) target = $region29
  $region28: #{ddrqn_forward.1} parent=0 // pred_region
    _
  $region29: #{ddrqn_forward.1} parent=0 // pred_fallthru
    _
  // Predicated region
  $region30: #{ddrqn_forward.1} parent=0 // pred_check
    _
  $region31: #{ddrqn_forward.1} parent=0 // pred_check_branch
    %33 = sbr.rel (0) target = $region33
  $region32: #{ddrqn_forward.1} parent=0 // pred_region
    _
  $region33: #{ddrqn_forward.1} parent=0 // pred_fallthru
    _
  // Predicated region
  $region34: #{ddrqn_forward.1} parent=0 // pred_check
    _
  $region35: #{ddrqn_forward.1} parent=0 // pred_check_branch
    %35 = sbr.rel (0) target = $region37
  $region36: #{ddrqn_forward.1} parent=0 // pred_region
    _
  $region37: #{ddrqn_forward.1} parent=0 // pred_fallthru
    _
  // Predicated region
  $region38: #{ddrqn_forward.1} parent=0 // pred_check
    _
  $region39: #{ddrqn_forward.1} parent=0 // pred_check_branch
    %37 = sbr.rel (0) target = $region41
  $region40: #{ddrqn_forward.1} parent=0 // pred_region
    _
  $region41: #{ddrqn_forward.1} parent=0 // pred_fallthru
    _
  %v38 = vld [vmem:[%s0] sm:$0xff]
  %v39 = vld [vmem:[%s0 + $0x8] sm:$0xff]
  %v40 = vld [vmem:[%s0 + $0x10] sm:$0xff]
  %v41 = vld [vmem:[%s0 + $0x18] sm:$0xff]
  %v42 = vld [vmem:[%s0 + $0x20] sm:$0xff]
  %v43 = vld [vmem:[%s0 + $0x28] sm:$0xff]
  %v44 = vld [vmem:[%s0 + $0x30] sm:$0xff]
  %v45 = vld [vmem:[%s0 + $0x38] sm:$0xff]
  %v46 = vld [vmem:[%s3] sm:$0xff]
  %v47 = vld [vmem:[%s3 + $0x8] sm:$0xf]
  %v48 = vld [vmem:[%s5] sm:$0x1]
  %v50 = vlaneseq
  %v51 = vshrl.u32 %v50, 7
  %v52 = vsub.s32 0, %v51
  %v53 = vrot.slane %v48, %v52
  %vm55 = vcmask 97280
  %v57 = vsel %vm55, %v38, 0
  %v60 = vsel %vm55, %v39, 0
  %v63 = vsel %vm55, %v40, 0
  %v66 = vsel %vm55, %v41, 0
  %v69 = vsel %vm55, %v42, 0
  %v72 = vsel %vm55, %v43, 0
  %v75 = vsel %vm55, %v44, 0
  %v78 = vsel %vm55, %v45, 0
  %vm80 = vcmask 1043456
  %v82 = vsel %vm80, %v47, 0
  %84 = vmatprep.subr.mxu0 0.0
  %85 = vmatpush1.msra.mxu0 %v46
  %86 = vmatprep.subr.mxu0 0.0
  %87 = vmatpush1.msra.mxu0 %v82
  %88 = vmatprep.subr.mxu0 0.0
  %89 = vmatpush1.msra.mxu0 0.0
  %90 = vmatprep.subr.mxu0 0.0
  %91 = vmatpush1.msra.mxu0 0.0
  %92 = vmatprep.subr.mxu0 0.0
  %93 = vmatpush1.msra.mxu0 0.0
  %94 = vmatprep.subr.mxu0 0.0
  %95 = vmatpush1.msra.mxu0 0.0
  %96 = vmatprep.subr.mxu0 0.0
  %97 = vmatpush1.msra.mxu0 0.0
  %98 = vmatprep.subr.mxu0 0.0
  %99 = vmatpush1.msra.mxu0 0.0
  %100 = vmatprep.subr.mxu0 0.0
  %101 = vmatpush1.msra.mxu0 0.0
  %102 = vmatprep.subr.mxu0 0.0
  %103 = vmatpush1.msra.mxu0 0.0
  %104 = vmatprep.subr.mxu0 0.0
  %105 = vmatpush1.msra.mxu0 0.0
  %106 = vmatprep.subr.mxu0 0.0
  %107 = vmatpush1.msra.mxu0 0.0
  %108 = vmatprep.subr.mxu0 0.0
  %109 = vmatpush1.msra.mxu0 0.0
  %110 = vmatprep.subr.mxu0 0.0
  %111 = vmatpush1.msra.mxu0 0.0
  %112 = vmatprep.subr.mxu0 0.0
  %113 = vmatpush1.msra.mxu0 0.0
  %114 = vmatprep.subr.mxu0 0.0
  %115 = vmatpush1.msra.mxu0 0.0
  %116 = vmatprep.subr.mxu0 0.0
  %117 = vmatpush1.msra.mxu0 0.0
  %118 = vmatprep.subr.mxu0 0.0
  %119 = vmatpush1.msra.mxu0 0.0
  %120 = vmatprep.subr.mxu0 0.0
  %121 = vmatpush1.msra.mxu0 0.0
  %122 = vmatprep.subr.mxu0 0.0
  %123 = vmatpush1.msra.mxu0 0.0
  %124 = vmatprep.subr.mxu0 0.0
  %125 = vmatpush1.msra.mxu0 0.0
  %126 = vmatprep.subr.mxu0 0.0
  %127 = vmatpush1.msra.mxu0 0.0
  %128 = vmatprep.subr.mxu0 0.0
  %129 = vmatpush1.msra.mxu0 0.0
  %130 = vmatprep.subr.mxu0 0.0
  %131 = vmatpush1.msra.mxu0 0.0
  %132 = vmatprep.subr.mxu0 0.0
  %133 = vmatpush1.msra.mxu0 0.0
  %134 = vmatprep.subr.mxu0 0.0
  %135 = vmatpush1.msra.mxu0 0.0
  %136 = vmatprep.subr.mxu0 0.0
  %137 = vmatpush1.msra.mxu0 0.0
  %138 = vmatprep.subr.mxu0 0.0
  %139 = vmatpush1.msra.mxu0 0.0
  %140 = vmatprep.subr.mxu0 0.0
  %141 = vmatpush1.msra.mxu0 0.0
  %142 = vmatprep.subr.mxu0 0.0
  %143 = vmatpush1.msra.mxu0 0.0
  %144 = vmatprep.subr.mxu0 0.0
  %145 = vmatpush1.msra.mxu0 0.0
  %146 = vmatprep.subr.mxu0 0.0
  %147 = vmatpush1.msra.mxu0 0.0
  %148 = vmatprep.mubr.f32.mxu0 0.0
  %149 = vmatmul.mubr.f32.gmra.mrb[0].mxu0 %v57
  %v150 = vpop.f32.mrb[0].mxu0
  %v151 = vadd.f32 %v53, %v150
  %v152 = vpop.f32.mrb[0].mxu0
  %153 = vmatprep.mubr.f32.mxu0 0.0
  %154 = vmatmul.mubr.f32.gmra.mrb[0].mxu0 %v60
  %v155 = vpop.f32.mrb[0].mxu0
  %v156 = vadd.f32 %v53, %v155
  %v157 = vpop.f32.mrb[0].mxu0
  %158 = vmatprep.mubr.f32.mxu0 0.0
  %159 = vmatmul.mubr.f32.gmra.mrb[0].mxu0 %v63
  %v160 = vpop.f32.mrb[0].mxu0
  %v161 = vadd.f32 %v53, %v160
  %v162 = vpop.f32.mrb[0].mxu0
  %163 = vmatprep.mubr.f32.mxu0 0.0
  %164 = vmatmul.mubr.f32.gmra.mrb[0].mxu0 %v66
  %v165 = vpop.f32.mrb[0].mxu0
  %v166 = vadd.f32 %v53, %v165
  %v167 = vpop.f32.mrb[0].mxu0
  %168 = vmatprep.mubr.f32.mxu0 0.0
  %169 = vmatmul.mubr.f32.gmra.mrb[0].mxu0 %v69
  %v170 = vpop.f32.mrb[0].mxu0
  %v171 = vadd.f32 %v53, %v170
  %v172 = vpop.f32.mrb[0].mxu0
  %173 = vmatprep.mubr.f32.mxu0 0.0
  %174 = vmatmul.mubr.f32.gmra.mrb[0].mxu0 %v72
  %v175 = vpop.f32.mrb[0].mxu0
  %v176 = vadd.f32 %v53, %v175
  %v177 = vpop.f32.mrb[0].mxu0
  %178 = vmatprep.mubr.f32.mxu0 0.0
  %179 = vmatmul.mubr.f32.gmra.mrb[0].mxu0 %v75
  %v180 = vpop.f32.mrb[0].mxu0
  %v181 = vadd.f32 %v53, %v180
  %v182 = vpop.f32.mrb[0].mxu0
  %183 = vmatprep.mubr.f32.mxu0 0.0
  %184 = vmatmul.mubr.f32.gmra.mrb[0].mxu0 %v78
  %v185 = vpop.f32.mrb[0].mxu0
  %v186 = vadd.f32 %v53, %v185
  %v187 = vpop.f32.mrb[0].mxu0
  %188 = vdwg.mxu0
  %189 = vst [vmem:[#allocation2] sm:$0xff] %v151
  %190 = vst [vmem:[#allocation2 + $0x8] sm:$0xff] %v156
  %191 = vst [vmem:[#allocation2 + $0x10] sm:$0xff] %v161
  %192 = vst [vmem:[#allocation2 + $0x18] sm:$0xff] %v166
  %193 = vst [vmem:[#allocation2 + $0x20] sm:$0xff] %v171
  %194 = vst [vmem:[#allocation2 + $0x28] sm:$0xff] %v176
  %195 = vst [vmem:[#allocation2 + $0x30] sm:$0xff] %v181
  %196 = vst [vmem:[#allocation2 + $0x38] sm:$0xff] %v186
  %v197 = vld [vmem:[%s4] sm:$0xff]
  %v198 = vld [vmem:[%s4 + $0x8] sm:$0xff]
  %v199 = vld [vmem:[%s4 + $0x10] sm:$0xff]
  %v200 = vld [vmem:[%s4 + $0x18] sm:$0xff]
  %v201 = vld [vmem:[%s1] sm:$0xff]
  %v202 = vld [vmem:[%s2] sm:$0xff]
  %v203 = vld [vmem:[#allocation2] sm:$0xff]
  %vm204 = vcmask 261120
  %v206 = vsel %vm204, %v201, 0
  %208 = vmatprep.subr.mxu0 0.0
  %209 = vmatpush1.msra.mxu0 %v197
  %210 = vmatprep.subr.mxu0 0.0
  %211 = vmatpush1.msra.mxu0 %v198
  %212 = vmatprep.subr.mxu0 0.0
  %213 = vmatpush1.msra.mxu0 %v199
  %214 = vmatprep.subr.mxu0 0.0
  %215 = vmatpush1.msra.mxu0 %v200
  %216 = vmatprep.subr.mxu0 0.0
  %217 = vmatpush1.msra.mxu0 0.0
  %218 = vmatprep.subr.mxu0 0.0
  %219 = vmatpush1.msra.mxu0 0.0
  %220 = vmatprep.subr.mxu0 0.0
  %221 = vmatpush1.msra.mxu0 0.0
  %222 = vmatprep.subr.mxu0 0.0
  %223 = vmatpush1.msra.mxu0 0.0
  %224 = vmatprep.subr.mxu0 0.0
  %225 = vmatpush1.msra.mxu0 0.0
  %226 = vmatprep.subr.mxu0 0.0
  %227 = vmatpush1.msra.mxu0 0.0
  %228 = vmatprep.subr.mxu0 0.0
  %229 = vmatpush1.msra.mxu0 0.0
  %230 = vmatprep.subr.mxu0 0.0
  %231 = vmatpush1.msra.mxu0 0.0
  %232 = vmatprep.subr.mxu0 0.0
  %233 = vmatpush1.msra.mxu0 0.0
  %234 = vmatprep.subr.mxu0 0.0
  %235 = vmatpush1.msra.mxu0 0.0
  %236 = vmatprep.subr.mxu0 0.0
  %237 = vmatpush1.msra.mxu0 0.0
  %238 = vmatprep.subr.mxu0 0.0
  %239 = vmatpush1.msra.mxu0 0.0
  %240 = vmatprep.subr.mxu0 0.0
  %241 = vmatpush1.msra.mxu0 0.0
  %242 = vmatprep.subr.mxu0 0.0
  %243 = vmatpush1.msra.mxu0 0.0
  %244 = vmatprep.subr.mxu0 0.0
  %245 = vmatpush1.msra.mxu0 0.0
  %246 = vmatprep.subr.mxu0 0.0
  %247 = vmatpush1.msra.mxu0 0.0
  %248 = vmatprep.subr.mxu0 0.0
  %249 = vmatpush1.msra.mxu0 0.0
  %250 = vmatprep.subr.mxu0 0.0
  %251 = vmatpush1.msra.mxu0 0.0
  %252 = vmatprep.subr.mxu0 0.0
  %253 = vmatpush1.msra.mxu0 0.0
  %254 = vmatprep.subr.mxu0 0.0
  %255 = vmatpush1.msra.mxu0 0.0
  %256 = vmatprep.subr.mxu0 0.0
  %257 = vmatpush1.msra.mxu0 0.0
  %258 = vmatprep.subr.mxu0 0.0
  %259 = vmatpush1.msra.mxu0 0.0
  %260 = vmatprep.subr.mxu0 0.0
  %261 = vmatpush1.msra.mxu0 0.0
  %262 = vmatprep.subr.mxu0 0.0
  %263 = vmatpush1.msra.mxu0 0.0
  %264 = vmatprep.subr.mxu0 0.0
  %265 = vmatpush1.msra.mxu0 0.0
  %266 = vmatprep.subr.mxu0 0.0
  %267 = vmatpush1.msra.mxu0 0.0
  %268 = vmatprep.subr.mxu0 0.0
  %269 = vmatpush1.msra.mxu0 0.0
  %270 = vmatprep.subr.mxu0 0.0
  %271 = vmatpush1.msra.mxu0 0.0
  %272 = vmatprep.mubr.f32.mxu0 0.0
  %273 = vmatmul.mubr.f32.gmra.mrb[0].mxu0 %v206
  %v274 = vpop.f32.mrb[0].mxu0
  %v275 = vadd.f32 0.0, %v274
  %v276 = vpop.f32.mrb[0].mxu0
  %277 = vdwg.mxu0
  %v278 = vadd.f32 %v203, %v275
  %v279 = vxor.u32 %v278, 2147483648
  %v280 = vmul.f32 %v279, 1.442695
  %v281 = vpow.pop %v280
  %v282 = vadd.f32 %v281, 1.0
  %v283 = vrcp.pop %v282
  %v284 = vmul.f32 1.0, %v283
  %v285 = vtanh.pop %v278
  %287 = vrot.lane.b32.xlu0 %v202, 32
  %v288 = vpop.permute.xlu0 %287
  %v290 = vmul.f32 %v284, %v288
  %292 = vrot.lane.b32.xlu0 %v285, 32
  %v293 = vpop.permute.xlu0 %292
  %v295 = vmul.f32 %v284, %v293
  %297 = vrot.lane.b32.xlu0 %v295, 32
  %v298 = vpop.permute.xlu0 %297
  %v300 = vadd.f32 %v290, %v298
  %v301 = vtanh.pop %v300
  %303 = vrot.lane.b32.xlu0 %v301, 32
  %v304 = vpop.permute.xlu0 %303
  %v306 = vmul.f32 %v284, %v304
  %308 = vrot.lane.b32.xlu0 %v306, 64
  %v309 = vpop.permute.xlu0 %308
  %311 = vst.msk [vmem:[#allocation3] sm:$0xff] %vm204, %v309
  %s312 = scalar_lea.vmem [#allocation2], 8
  %v313 = vld [vmem:[%s312] sm:$0xff]
  %v314 = vsel %vm204, %v309, 0
  %316 = vmatprep.subr.mxu0 0.0
  %317 = vmatpush1.msra.mxu0 %v197
  %318 = vmatprep.subr.mxu0 0.0
  %319 = vmatpush1.msra.mxu0 %v198
  %320 = vmatprep.subr.mxu0 0.0
  %321 = vmatpush1.msra.mxu0 %v199
  %322 = vmatprep.subr.mxu0 0.0
  %323 = vmatpush1.msra.mxu0 %v200
  %324 = vmatprep.subr.mxu0 0.0
  %325 = vmatpush1.msra.mxu0 0.0
  %326 = vmatprep.subr.mxu0 0.0
  %327 = vmatpush1.msra.mxu0 0.0
  %328 = vmatprep.subr.mxu0 0.0
  %329 = vmatpush1.msra.mxu0 0.0
  %330 = vmatprep.subr.mxu0 0.0
  %331 = vmatpush1.msra.mxu0 0.0
  %332 = vmatprep.subr.mxu0 0.0
  %333 = vmatpush1.msra.mxu0 0.0
  %334 = vmatprep.subr.mxu0 0.0
  %335 = vmatpush1.msra.mxu0 0.0
  %336 = vmatprep.subr.mxu0 0.0
  %337 = vmatpush1.msra.mxu0 0.0
  %338 = vmatprep.subr.mxu0 0.0
  %339 = vmatpush1.msra.mxu0 0.0
  %340 = vmatprep.subr.mxu0 0.0
  %341 = vmatpush1.msra.mxu0 0.0
  %342 = vmatprep.subr.mxu0 0.0
  %343 = vmatpush1.msra.mxu0 0.0
  %344 = vmatprep.subr.mxu0 0.0
  %345 = vmatpush1.msra.mxu0 0.0
  %346 = vmatprep.subr.mxu0 0.0
  %347 = vmatpush1.msra.mxu0 0.0
  %348 = vmatprep.subr.mxu0 0.0
  %349 = vmatpush1.msra.mxu0 0.0
  %350 = vmatprep.subr.mxu0 0.0
  %351 = vmatpush1.msra.mxu0 0.0
  %352 = vmatprep.subr.mxu0 0.0
  %353 = vmatpush1.msra.mxu0 0.0
  %354 = vmatprep.subr.mxu0 0.0
  %355 = vmatpush1.msra.mxu0 0.0
  %356 = vmatprep.subr.mxu0 0.0
  %357 = vmatpush1.msra.mxu0 0.0
  %358 = vmatprep.subr.mxu0 0.0
  %359 = vmatpush1.msra.mxu0 0.0
  %360 = vmatprep.subr.mxu0 0.0
  %361 = vmatpush1.msra.mxu0 0.0
  %362 = vmatprep.subr.mxu0 0.0
  %363 = vmatpush1.msra.mxu0 0.0
  %364 = vmatprep.subr.mxu0 0.0
  %365 = vmatpush1.msra.mxu0 0.0
  %366 = vmatprep.subr.mxu0 0.0
  %367 = vmatpush1.msra.mxu0 0.0
  %368 = vmatprep.subr.mxu0 0.0
  %369 = vmatpush1.msra.mxu0 0.0
  %370 = vmatprep.subr.mxu0 0.0
  %371 = vmatpush1.msra.mxu0 0.0
  %372 = vmatprep.subr.mxu0 0.0
  %373 = vmatpush1.msra.mxu0 0.0
  %374 = vmatprep.subr.mxu0 0.0
  %375 = vmatpush1.msra.mxu0 0.0
  %376 = vmatprep.subr.mxu0 0.0
  %377 = vmatpush1.msra.mxu0 0.0
  %378 = vmatprep.subr.mxu0 0.0
  %379 = vmatpush1.msra.mxu0 0.0
  %380 = vmatprep.mubr.f32.mxu0 0.0
  %381 = vmatmul.mubr.f32.gmra.mrb[0].mxu0 %v314
  %v382 = vpop.f32.mrb[0].mxu0
  %v383 = vadd.f32 0.0, %v382
  %v384 = vpop.f32.mrb[0].mxu0
  %385 = vdwg.mxu0
  %v386 = vadd.f32 %v313, %v383
  %v387 = vxor.u32 %v386, 2147483648
  %v388 = vmul.f32 %v387, 1.442695
  %v389 = vpow.pop %v388
  %v390 = vadd.f32 %v389, 1.0
  %v391 = vrcp.pop %v390
  %v392 = vmul.f32 1.0, %v391
  %v393 = vtanh.pop %v386
  %v394 = vmul.f32 %v392, %v300
  %396 = vrot.lane.b32.xlu0 %v393, 32
  %v397 = vpop.permute.xlu0 %396
  %v399 = vmul.f32 %v392, %v397
  %401 = vrot.lane.b32.xlu0 %v399, 32
  %v402 = vpop.permute.xlu0 %401
  %v404 = vadd.f32 %v394, %v402
  %v405 = vtanh.pop %v404
  %407 = vrot.lane.b32.xlu0 %v405, 32
  %v408 = vpop.permute.xlu0 %407
  %v410 = vmul.f32 %v392, %v408
  %412 = vrot.lane.b32.xlu0 %v410, 64
  %v413 = vpop.permute.xlu0 %412
  %s415 = scalar_lea.vmem [#allocation3], 8
  %416 = vst.msk [vmem:[%s415] sm:$0xff] %vm204, %v413
  %s417 = scalar_lea.vmem [#allocation2], 16
  %v418 = vld [vmem:[%s417] sm:$0xff]
  %v419 = vsel %vm204, %v413, 0
  %421 = vmatprep.subr.mxu0 0.0
  %422 = vmatpush1.msra.mxu0 %v197
  %423 = vmatprep.subr.mxu0 0.0
  %424 = vmatpush1.msra.mxu0 %v198
  %425 = vmatprep.subr.mxu0 0.0
  %426 = vmatpush1.msra.mxu0 %v199
  %427 = vmatprep.subr.mxu0 0.0
  %428 = vmatpush1.msra.mxu0 %v200
  %429 = vmatprep.subr.mxu0 0.0
  %430 = vmatpush1.msra.mxu0 0.0
  %431 = vmatprep.subr.mxu0 0.0
  %432 = vmatpush1.msra.mxu0 0.0
  %433 = vmatprep.subr.mxu0 0.0
  %434 = vmatpush1.msra.mxu0 0.0
  %435 = vmatprep.subr.mxu0 0.0
  %436 = vmatpush1.msra.mxu0 0.0
  %437 = vmatprep.subr.mxu0 0.0
  %438 = vmatpush1.msra.mxu0 0.0
  %439 = vmatprep.subr.mxu0 0.0
  %440 = vmatpush1.msra.mxu0 0.0
  %441 = vmatprep.subr.mxu0 0.0
  %442 = vmatpush1.msra.mxu0 0.0
  %443 = vmatprep.subr.mxu0 0.0
  %444 = vmatpush1.msra.mxu0 0.0
  %445 = vmatprep.subr.mxu0 0.0
  %446 = vmatpush1.msra.mxu0 0.0
  %447 = vmatprep.subr.mxu0 0.0
  %448 = vmatpush1.msra.mxu0 0.0
  %449 = vmatprep.subr.mxu0 0.0
  %450 = vmatpush1.msra.mxu0 0.0
  %451 = vmatprep.subr.mxu0 0.0
  %452 = vmatpush1.msra.mxu0 0.0
  %453 = vmatprep.subr.mxu0 0.0
  %454 = vmatpush1.msra.mxu0 0.0
  %455 = vmatprep.subr.mxu0 0.0
  %456 = vmatpush1.msra.mxu0 0.0
  %457 = vmatprep.subr.mxu0 0.0
  %458 = vmatpush1.msra.mxu0 0.0
  %459 = vmatprep.subr.mxu0 0.0
  %460 = vmatpush1.msra.mxu0 0.0
  %461 = vmatprep.subr.mxu0 0.0
  %462 = vmatpush1.msra.mxu0 0.0
  %463 = vmatprep.subr.mxu0 0.0
  %464 = vmatpush1.msra.mxu0 0.0
  %465 = vmatprep.subr.mxu0 0.0
  %466 = vmatpush1.msra.mxu0 0.0
  %467 = vmatprep.subr.mxu0 0.0
  %468 = vmatpush1.msra.mxu0 0.0
  %469 = vmatprep.subr.mxu0 0.0
  %470 = vmatpush1.msra.mxu0 0.0
  %471 = vmatprep.subr.mxu0 0.0
  %472 = vmatpush1.msra.mxu0 0.0
  %473 = vmatprep.subr.mxu0 0.0
  %474 = vmatpush1.msra.mxu0 0.0
  %475 = vmatprep.subr.mxu0 0.0
  %476 = vmatpush1.msra.mxu0 0.0
  %477 = vmatprep.subr.mxu0 0.0
  %478 = vmatpush1.msra.mxu0 0.0
  %479 = vmatprep.subr.mxu0 0.0
  %480 = vmatpush1.msra.mxu0 0.0
  %481 = vmatprep.subr.mxu0 0.0
  %482 = vmatpush1.msra.mxu0 0.0
  %483 = vmatprep.subr.mxu0 0.0
  %484 = vmatpush1.msra.mxu0 0.0
  %485 = vmatprep.mubr.f32.mxu0 0.0
  %486 = vmatmul.mubr.f32.gmra.mrb[0].mxu0 %v419
  %v487 = vpop.f32.mrb[0].mxu0
  %v488 = vadd.f32 0.0, %v487
  %v489 = vpop.f32.mrb[0].mxu0
  %490 = vdwg.mxu0
  %v491 = vadd.f32 %v418, %v488
  %v492 = vxor.u32 %v491, 2147483648
  %v493 = vmul.f32 %v492, 1.442695
  %v494 = vpow.pop %v493
  %v495 = vadd.f32 %v494, 1.0
  %v496 = vrcp.pop %v495
  %v497 = vmul.f32 1.0, %v496
  %v498 = vtanh.pop %v491
  %v499 = vmul.f32 %v497, %v404
  %501 = vrot.lane.b32.xlu0 %v498, 32
  %v502 = vpop.permute.xlu0 %501
  %v504 = vmul.f32 %v497, %v502
  %506 = vrot.lane.b32.xlu0 %v504, 32
  %v507 = vpop.permute.xlu0 %506
  %v509 = vadd.f32 %v499, %v507
  %v510 = vtanh.pop %v509
  %512 = vrot.lane.b32.xlu0 %v510, 32
  %v513 = vpop.permute.xlu0 %512
  %v515 = vmul.f32 %v497, %v513
  %517 = vrot.lane.b32.xlu0 %v515, 64
  %v518 = vpop.permute.xlu0 %517
  %s520 = scalar_lea.vmem [#allocation3], 16
  %521 = vst.msk [vmem:[%s520] sm:$0xff] %vm204, %v518
  %s522 = scalar_lea.vmem [#allocation2], 24
  %v523 = vld [vmem:[%s522] sm:$0xff]
  %v524 = vsel %vm204, %v518, 0
  %526 = vmatprep.subr.mxu0 0.0
  %527 = vmatpush1.msra.mxu0 %v197
  %528 = vmatprep.subr.mxu0 0.0
  %529 = vmatpush1.msra.mxu0 %v198
  %530 = vmatprep.subr.mxu0 0.0
  %531 = vmatpush1.msra.mxu0 %v199
  %532 = vmatprep.subr.mxu0 0.0
  %533 = vmatpush1.msra.mxu0 %v200
  %534 = vmatprep.subr.mxu0 0.0
  %535 = vmatpush1.msra.mxu0 0.0
  %536 = vmatprep.subr.mxu0 0.0
  %537 = vmatpush1.msra.mxu0 0.0
  %538 = vmatprep.subr.mxu0 0.0
  %539 = vmatpush1.msra.mxu0 0.0
  %540 = vmatprep.subr.mxu0 0.0
  %541 = vmatpush1.msra.mxu0 0.0
  %542 = vmatprep.subr.mxu0 0.0
  %543 = vmatpush1.msra.mxu0 0.0
  %544 = vmatprep.subr.mxu0 0.0
  %545 = vmatpush1.msra.mxu0 0.0
  %546 = vmatprep.subr.mxu0 0.0
  %547 = vmatpush1.msra.mxu0 0.0
  %548 = vmatprep.subr.mxu0 0.0
  %549 = vmatpush1.msra.mxu0 0.0
  %550 = vmatprep.subr.mxu0 0.0
  %551 = vmatpush1.msra.mxu0 0.0
  %552 = vmatprep.subr.mxu0 0.0
  %553 = vmatpush1.msra.mxu0 0.0
  %554 = vmatprep.subr.mxu0 0.0
  %555 = vmatpush1.msra.mxu0 0.0
  %556 = vmatprep.subr.mxu0 0.0
  %557 = vmatpush1.msra.mxu0 0.0
  %558 = vmatprep.subr.mxu0 0.0
  %559 = vmatpush1.msra.mxu0 0.0
  %560 = vmatprep.subr.mxu0 0.0
  %561 = vmatpush1.msra.mxu0 0.0
  %562 = vmatprep.subr.mxu0 0.0
  %563 = vmatpush1.msra.mxu0 0.0
  %564 = vmatprep.subr.mxu0 0.0
  %565 = vmatpush1.msra.mxu0 0.0
  %566 = vmatprep.subr.mxu0 0.0
  %567 = vmatpush1.msra.mxu0 0.0
  %568 = vmatprep.subr.mxu0 0.0
  %569 = vmatpush1.msra.mxu0 0.0
  %570 = vmatprep.subr.mxu0 0.0
  %571 = vmatpush1.msra.mxu0 0.0
  %572 = vmatprep.subr.mxu0 0.0
  %573 = vmatpush1.msra.mxu0 0.0
  %574 = vmatprep.subr.mxu0 0.0
  %575 = vmatpush1.msra.mxu0 0.0
  %576 = vmatprep.subr.mxu0 0.0
  %577 = vmatpush1.msra.mxu0 0.0
  %578 = vmatprep.subr.mxu0 0.0
  %579 = vmatpush1.msra.mxu0 0.0
  %580 = vmatprep.subr.mxu0 0.0
  %581 = vmatpush1.msra.mxu0 0.0
  %582 = vmatprep.subr.mxu0 0.0
  %583 = vmatpush1.msra.mxu0 0.0
  %584 = vmatprep.subr.mxu0 0.0
  %585 = vmatpush1.msra.mxu0 0.0
  %586 = vmatprep.subr.mxu0 0.0
  %587 = vmatpush1.msra.mxu0 0.0
  %588 = vmatprep.subr.mxu0 0.0
  %589 = vmatpush1.msra.mxu0 0.0
  %590 = vmatprep.mubr.f32.mxu0 0.0
  %591 = vmatmul.mubr.f32.gmra.mrb[0].mxu0 %v524
  %v592 = vpop.f32.mrb[0].mxu0
  %v593 = vadd.f32 0.0, %v592
  %v594 = vpop.f32.mrb[0].mxu0
  %595 = vdwg.mxu0
  %v596 = vadd.f32 %v523, %v593
  %v597 = vxor.u32 %v596, 2147483648
  %v598 = vmul.f32 %v597, 1.442695
  %v599 = vpow.pop %v598
  %v600 = vadd.f32 %v599, 1.0
  %v601 = vrcp.pop %v600
  %v602 = vmul.f32 1.0, %v601
  %v603 = vtanh.pop %v596
  %v604 = vmul.f32 %v602, %v509
  %606 = vrot.lane.b32.xlu0 %v603, 32
  %v607 = vpop.permute.xlu0 %606
  %v609 = vmul.f32 %v602, %v607
  %611 = vrot.lane.b32.xlu0 %v609, 32
  %v612 = vpop.permute.xlu0 %611
  %v614 = vadd.f32 %v604, %v612
  %v615 = vtanh.pop %v614
  %617 = vrot.lane.b32.xlu0 %v615, 32
  %v618 = vpop.permute.xlu0 %617
  %v620 = vmul.f32 %v602, %v618
  %622 = vrot.lane.b32.xlu0 %v620, 64
  %v623 = vpop.permute.xlu0 %622
  %s625 = scalar_lea.vmem [#allocation3], 24
  %626 = vst.msk [vmem:[%s625] sm:$0xff] %vm204, %v623
  %s627 = scalar_lea.vmem [#allocation2], 32
  %v628 = vld [vmem:[%s627] sm:$0xff]
  %v629 = vsel %vm204, %v623, 0
  %631 = vmatprep.subr.mxu0 0.0
  %632 = vmatpush1.msra.mxu0 %v197
  %633 = vmatprep.subr.mxu0 0.0
  %634 = vmatpush1.msra.mxu0 %v198
  %635 = vmatprep.subr.mxu0 0.0
  %636 = vmatpush1.msra.mxu0 %v199
  %637 = vmatprep.subr.mxu0 0.0
  %638 = vmatpush1.msra.mxu0 %v200
  %639 = vmatprep.subr.mxu0 0.0
  %640 = vmatpush1.msra.mxu0 0.0
  %641 = vmatprep.subr.mxu0 0.0
  %642 = vmatpush1.msra.mxu0 0.0
  %643 = vmatprep.subr.mxu0 0.0
  %644 = vmatpush1.msra.mxu0 0.0
  %645 = vmatprep.subr.mxu0 0.0
  %646 = vmatpush1.msra.mxu0 0.0
  %647 = vmatprep.subr.mxu0 0.0
  %648 = vmatpush1.msra.mxu0 0.0
  %649 = vmatprep.subr.mxu0 0.0
  %650 = vmatpush1.msra.mxu0 0.0
  %651 = vmatprep.subr.mxu0 0.0
  %652 = vmatpush1.msra.mxu0 0.0
  %653 = vmatprep.subr.mxu0 0.0
  %654 = vmatpush1.msra.mxu0 0.0
  %655 = vmatprep.subr.mxu0 0.0
  %656 = vmatpush1.msra.mxu0 0.0
  %657 = vmatprep.subr.mxu0 0.0
  %658 = vmatpush1.msra.mxu0 0.0
  %659 = vmatprep.subr.mxu0 0.0
  %660 = vmatpush1.msra.mxu0 0.0
  %661 = vmatprep.subr.mxu0 0.0
  %662 = vmatpush1.msra.mxu0 0.0
  %663 = vmatprep.subr.mxu0 0.0
  %664 = vmatpush1.msra.mxu0 0.0
  %665 = vmatprep.subr.mxu0 0.0
  %666 = vmatpush1.msra.mxu0 0.0
  %667 = vmatprep.subr.mxu0 0.0
  %668 = vmatpush1.msra.mxu0 0.0
  %669 = vmatprep.subr.mxu0 0.0
  %670 = vmatpush1.msra.mxu0 0.0
  %671 = vmatprep.subr.mxu0 0.0
  %672 = vmatpush1.msra.mxu0 0.0
  %673 = vmatprep.subr.mxu0 0.0
  %674 = vmatpush1.msra.mxu0 0.0
  %675 = vmatprep.subr.mxu0 0.0
  %676 = vmatpush1.msra.mxu0 0.0
  %677 = vmatprep.subr.mxu0 0.0
  %678 = vmatpush1.msra.mxu0 0.0
  %679 = vmatprep.subr.mxu0 0.0
  %680 = vmatpush1.msra.mxu0 0.0
  %681 = vmatprep.subr.mxu0 0.0
  %682 = vmatpush1.msra.mxu0 0.0
  %683 = vmatprep.subr.mxu0 0.0
  %684 = vmatpush1.msra.mxu0 0.0
  %685 = vmatprep.subr.mxu0 0.0
  %686 = vmatpush1.msra.mxu0 0.0
  %687 = vmatprep.subr.mxu0 0.0
  %688 = vmatpush1.msra.mxu0 0.0
  %689 = vmatprep.subr.mxu0 0.0
  %690 = vmatpush1.msra.mxu0 0.0
  %691 = vmatprep.subr.mxu0 0.0
  %692 = vmatpush1.msra.mxu0 0.0
  %693 = vmatprep.subr.mxu0 0.0
  %694 = vmatpush1.msra.mxu0 0.0
  %695 = vmatprep.mubr.f32.mxu0 0.0
  %696 = vmatmul.mubr.f32.gmra.mrb[0].mxu0 %v629
  %v697 = vpop.f32.mrb[0].mxu0
  %v698 = vadd.f32 0.0, %v697
  %v699 = vpop.f32.mrb[0].mxu0
  %700 = vdwg.mxu0
  %v701 = vadd.f32 %v628, %v698
  %v702 = vxor.u32 %v701, 2147483648
  %v703 = vmul.f32 %v702, 1.442695
  %v704 = vpow.pop %v703
  %v705 = vadd.f32 %v704, 1.0
  %v706 = vrcp.pop %v705
  %v707 = vmul.f32 1.0, %v706
  %v708 = vtanh.pop %v701
  %v709 = vmul.f32 %v707, %v614
  %711 = vrot.lane.b32.xlu0 %v708, 32
  %v712 = vpop.permute.xlu0 %711
  %v714 = vmul.f32 %v707, %v712
  %716 = vrot.lane.b32.xlu0 %v714, 32
  %v717 = vpop.permute.xlu0 %716
  %v719 = vadd.f32 %v709, %v717
  %v720 = vtanh.pop %v719
  %722 = vrot.lane.b32.xlu0 %v720, 32
  %v723 = vpop.permute.xlu0 %722
  %v725 = vmul.f32 %v707, %v723
  %727 = vrot.lane.b32.xlu0 %v725, 64
  %v728 = vpop.permute.xlu0 %727
  %s730 = scalar_lea.vmem [#allocation3], 32
  %731 = vst.msk [vmem:[%s730] sm:$0xff] %vm204, %v728
  %s732 = scalar_lea.vmem [#allocation2], 40
  %v733 = vld [vmem:[%s732] sm:$0xff]
  %v734 = vsel %vm204, %v728, 0
  %736 = vmatprep.subr.mxu0 0.0
  %737 = vmatpush1.msra.mxu0 %v197
  %738 = vmatprep.subr.mxu0 0.0
  %739 = vmatpush1.msra.mxu0 %v198
  %740 = vmatprep.subr.mxu0 0.0
  %741 = vmatpush1.msra.mxu0 %v199
  %742 = vmatprep.subr.mxu0 0.0
  %743 = vmatpush1.msra.mxu0 %v200
  %744 = vmatprep.subr.mxu0 0.0
  %745 = vmatpush1.msra.mxu0 0.0
  %746 = vmatprep.subr.mxu0 0.0
  %747 = vmatpush1.msra.mxu0 0.0
  %748 = vmatprep.subr.mxu0 0.0
  %749 = vmatpush1.msra.mxu0 0.0
  %750 = vmatprep.subr.mxu0 0.0
  %751 = vmatpush1.msra.mxu0 0.0
  %752 = vmatprep.subr.mxu0 0.0
  %753 = vmatpush1.msra.mxu0 0.0
  %754 = vmatprep.subr.mxu0 0.0
  %755 = vmatpush1.msra.mxu0 0.0
  %756 = vmatprep.subr.mxu0 0.0
  %757 = vmatpush1.msra.mxu0 0.0
  %758 = vmatprep.subr.mxu0 0.0
  %759 = vmatpush1.msra.mxu0 0.0
  %760 = vmatprep.subr.mxu0 0.0
  %761 = vmatpush1.msra.mxu0 0.0
  %762 = vmatprep.subr.mxu0 0.0
  %763 = vmatpush1.msra.mxu0 0.0
  %764 = vmatprep.subr.mxu0 0.0
  %765 = vmatpush1.msra.mxu0 0.0
  %766 = vmatprep.subr.mxu0 0.0
  %767 = vmatpush1.msra.mxu0 0.0
  %768 = vmatprep.subr.mxu0 0.0
  %769 = vmatpush1.msra.mxu0 0.0
  %770 = vmatprep.subr.mxu0 0.0
  %771 = vmatpush1.msra.mxu0 0.0
  %772 = vmatprep.subr.mxu0 0.0
  %773 = vmatpush1.msra.mxu0 0.0
  %774 = vmatprep.subr.mxu0 0.0
  %775 = vmatpush1.msra.mxu0 0.0
  %776 = vmatprep.subr.mxu0 0.0
  %777 = vmatpush1.msra.mxu0 0.0
  %778 = vmatprep.subr.mxu0 0.0
  %779 = vmatpush1.msra.mxu0 0.0
  %780 = vmatprep.subr.mxu0 0.0
  %781 = vmatpush1.msra.mxu0 0.0
  %782 = vmatprep.subr.mxu0 0.0
  %783 = vmatpush1.msra.mxu0 0.0
  %784 = vmatprep.subr.mxu0 0.0
  %785 = vmatpush1.msra.mxu0 0.0
  %786 = vmatprep.subr.mxu0 0.0
  %787 = vmatpush1.msra.mxu0 0.0
  %788 = vmatprep.subr.mxu0 0.0
  %789 = vmatpush1.msra.mxu0 0.0
  %790 = vmatprep.subr.mxu0 0.0
  %791 = vmatpush1.msra.mxu0 0.0
  %792 = vmatprep.subr.mxu0 0.0
  %793 = vmatpush1.msra.mxu0 0.0
  %794 = vmatprep.subr.mxu0 0.0
  %795 = vmatpush1.msra.mxu0 0.0
  %796 = vmatprep.subr.mxu0 0.0
  %797 = vmatpush1.msra.mxu0 0.0
  %798 = vmatprep.subr.mxu0 0.0
  %799 = vmatpush1.msra.mxu0 0.0
  %800 = vmatprep.mubr.f32.mxu0 0.0
  %801 = vmatmul.mubr.f32.gmra.mrb[0].mxu0 %v734
  %v802 = vpop.f32.mrb[0].mxu0
  %v803 = vadd.f32 0.0, %v802
  %v804 = vpop.f32.mrb[0].mxu0
  %805 = vdwg.mxu0
  %v806 = vadd.f32 %v733, %v803
  %v807 = vxor.u32 %v806, 2147483648
  %v808 = vmul.f32 %v807, 1.442695
  %v809 = vpow.pop %v808
  %v810 = vadd.f32 %v809, 1.0
  %v811 = vrcp.pop %v810
  %v812 = vmul.f32 1.0, %v811
  %v813 = vtanh.pop %v806
  %v814 = vmul.f32 %v812, %v719
  %816 = vrot.lane.b32.xlu0 %v813, 32
  %v817 = vpop.permute.xlu0 %816
  %v819 = vmul.f32 %v812, %v817
  %821 = vrot.lane.b32.xlu0 %v819, 32
  %v822 = vpop.permute.xlu0 %821
  %v824 = vadd.f32 %v814, %v822
  %v825 = vtanh.pop %v824
  %827 = vrot.lane.b32.xlu0 %v825, 32
  %v828 = vpop.permute.xlu0 %827
  %v830 = vmul.f32 %v812, %v828
  %832 = vrot.lane.b32.xlu0 %v830, 64
  %v833 = vpop.permute.xlu0 %832
  %s835 = scalar_lea.vmem [#allocation3], 40
  %836 = vst.msk [vmem:[%s835] sm:$0xff] %vm204, %v833
  %s837 = scalar_lea.vmem [#allocation2], 48
  %v838 = vld [vmem:[%s837] sm:$0xff]
  %v839 = vsel %vm204, %v833, 0
  %841 = vmatprep.subr.mxu0 0.0
  %842 = vmatpush1.msra.mxu0 %v197
  %843 = vmatprep.subr.mxu0 0.0
  %844 = vmatpush1.msra.mxu0 %v198
  %845 = vmatprep.subr.mxu0 0.0
  %846 = vmatpush1.msra.mxu0 %v199
  %847 = vmatprep.subr.mxu0 0.0
  %848 = vmatpush1.msra.mxu0 %v200
  %849 = vmatprep.subr.mxu0 0.0
  %850 = vmatpush1.msra.mxu0 0.0
  %851 = vmatprep.subr.mxu0 0.0
  %852 = vmatpush1.msra.mxu0 0.0
  %853 = vmatprep.subr.mxu0 0.0
  %854 = vmatpush1.msra.mxu0 0.0
  %855 = vmatprep.subr.mxu0 0.0
  %856 = vmatpush1.msra.mxu0 0.0
  %857 = vmatprep.subr.mxu0 0.0
  %858 = vmatpush1.msra.mxu0 0.0
  %859 = vmatprep.subr.mxu0 0.0
  %860 = vmatpush1.msra.mxu0 0.0
  %861 = vmatprep.subr.mxu0 0.0
  %862 = vmatpush1.msra.mxu0 0.0
  %863 = vmatprep.subr.mxu0 0.0
  %864 = vmatpush1.msra.mxu0 0.0
  %865 = vmatprep.subr.mxu0 0.0
  %866 = vmatpush1.msra.mxu0 0.0
  %867 = vmatprep.subr.mxu0 0.0
  %868 = vmatpush1.msra.mxu0 0.0
  %869 = vmatprep.subr.mxu0 0.0
  %870 = vmatpush1.msra.mxu0 0.0
  %871 = vmatprep.subr.mxu0 0.0
  %872 = vmatpush1.msra.mxu0 0.0
  %873 = vmatprep.subr.mxu0 0.0
  %874 = vmatpush1.msra.mxu0 0.0
  %875 = vmatprep.subr.mxu0 0.0
  %876 = vmatpush1.msra.mxu0 0.0
  %877 = vmatprep.subr.mxu0 0.0
  %878 = vmatpush1.msra.mxu0 0.0
  %879 = vmatprep.subr.mxu0 0.0
  %880 = vmatpush1.msra.mxu0 0.0
  %881 = vmatprep.subr.mxu0 0.0
  %882 = vmatpush1.msra.mxu0 0.0
  %883 = vmatprep.subr.mxu0 0.0
  %884 = vmatpush1.msra.mxu0 0.0
  %885 = vmatprep.subr.mxu0 0.0
  %886 = vmatpush1.msra.mxu0 0.0
  %887 = vmatprep.subr.mxu0 0.0
  %888 = vmatpush1.msra.mxu0 0.0
  %889 = vmatprep.subr.mxu0 0.0
  %890 = vmatpush1.msra.mxu0 0.0
  %891 = vmatprep.subr.mxu0 0.0
  %892 = vmatpush1.msra.mxu0 0.0
  %893 = vmatprep.subr.mxu0 0.0
  %894 = vmatpush1.msra.mxu0 0.0
  %895 = vmatprep.subr.mxu0 0.0
  %896 = vmatpush1.msra.mxu0 0.0
  %897 = vmatprep.subr.mxu0 0.0
  %898 = vmatpush1.msra.mxu0 0.0
  %899 = vmatprep.subr.mxu0 0.0
  %900 = vmatpush1.msra.mxu0 0.0
  %901 = vmatprep.subr.mxu0 0.0
  %902 = vmatpush1.msra.mxu0 0.0
  %903 = vmatprep.subr.mxu0 0.0
  %904 = vmatpush1.msra.mxu0 0.0
  %905 = vmatprep.mubr.f32.mxu0 0.0
  %906 = vmatmul.mubr.f32.gmra.mrb[0].mxu0 %v839
  %v907 = vpop.f32.mrb[0].mxu0
  %v908 = vadd.f32 0.0, %v907
  %v909 = vpop.f32.mrb[0].mxu0
  %910 = vdwg.mxu0
  %v911 = vadd.f32 %v838, %v908
  %v912 = vxor.u32 %v911, 2147483648
  %v913 = vmul.f32 %v912, 1.442695
  %v914 = vpow.pop %v913
  %v915 = vadd.f32 %v914, 1.0
  %v916 = vrcp.pop %v915
  %v917 = vmul.f32 1.0, %v916
  %v918 = vtanh.pop %v911
  %v919 = vmul.f32 %v917, %v824
  %921 = vrot.lane.b32.xlu0 %v918, 32
  %v922 = vpop.permute.xlu0 %921
  %v924 = vmul.f32 %v917, %v922
  %926 = vrot.lane.b32.xlu0 %v924, 32
  %v927 = vpop.permute.xlu0 %926
  %v929 = vadd.f32 %v919, %v927
  %v930 = vtanh.pop %v929
  %932 = vrot.lane.b32.xlu0 %v930, 32
  %v933 = vpop.permute.xlu0 %932
  %v935 = vmul.f32 %v917, %v933
  %937 = vrot.lane.b32.xlu0 %v935, 64
  %v938 = vpop.permute.xlu0 %937
  %s940 = scalar_lea.vmem [#allocation3], 48
  %941 = vst.msk [vmem:[%s940] sm:$0xff] %vm204, %v938
  %s942 = scalar_lea.vmem [#allocation2], 56
  %v943 = vld [vmem:[%s942] sm:$0xff]
  %v944 = vsel %vm204, %v938, 0
  %946 = vmatprep.subr.mxu0 0.0
  %947 = vmatpush1.msra.mxu0 %v197
  %948 = vmatprep.subr.mxu0 0.0
  %949 = vmatpush1.msra.mxu0 %v198
  %950 = vmatprep.subr.mxu0 0.0
  %951 = vmatpush1.msra.mxu0 %v199
  %952 = vmatprep.subr.mxu0 0.0
  %953 = vmatpush1.msra.mxu0 %v200
  %954 = vmatprep.subr.mxu0 0.0
  %955 = vmatpush1.msra.mxu0 0.0
  %956 = vmatprep.subr.mxu0 0.0
  %957 = vmatpush1.msra.mxu0 0.0
  %958 = vmatprep.subr.mxu0 0.0
  %959 = vmatpush1.msra.mxu0 0.0
  %960 = vmatprep.subr.mxu0 0.0
  %961 = vmatpush1.msra.mxu0 0.0
  %962 = vmatprep.subr.mxu0 0.0
  %963 = vmatpush1.msra.mxu0 0.0
  %964 = vmatprep.subr.mxu0 0.0
  %965 = vmatpush1.msra.mxu0 0.0
  %966 = vmatprep.subr.mxu0 0.0
  %967 = vmatpush1.msra.mxu0 0.0
  %968 = vmatprep.subr.mxu0 0.0
  %969 = vmatpush1.msra.mxu0 0.0
  %970 = vmatprep.subr.mxu0 0.0
  %971 = vmatpush1.msra.mxu0 0.0
  %972 = vmatprep.subr.mxu0 0.0
  %973 = vmatpush1.msra.mxu0 0.0
  %974 = vmatprep.subr.mxu0 0.0
  %975 = vmatpush1.msra.mxu0 0.0
  %976 = vmatprep.subr.mxu0 0.0
  %977 = vmatpush1.msra.mxu0 0.0
  %978 = vmatprep.subr.mxu0 0.0
  %979 = vmatpush1.msra.mxu0 0.0
  %980 = vmatprep.subr.mxu0 0.0
  %981 = vmatpush1.msra.mxu0 0.0
  %982 = vmatprep.subr.mxu0 0.0
  %983 = vmatpush1.msra.mxu0 0.0
  %984 = vmatprep.subr.mxu0 0.0
  %985 = vmatpush1.msra.mxu0 0.0
  %986 = vmatprep.subr.mxu0 0.0
  %987 = vmatpush1.msra.mxu0 0.0
  %988 = vmatprep.subr.mxu0 0.0
  %989 = vmatpush1.msra.mxu0 0.0
  %990 = vmatprep.subr.mxu0 0.0
  %991 = vmatpush1.msra.mxu0 0.0
  %992 = vmatprep.subr.mxu0 0.0
  %993 = vmatpush1.msra.mxu0 0.0
  %994 = vmatprep.subr.mxu0 0.0
  %995 = vmatpush1.msra.mxu0 0.0
  %996 = vmatprep.subr.mxu0 0.0
  %997 = vmatpush1.msra.mxu0 0.0
  %998 = vmatprep.subr.mxu0 0.0
  %999 = vmatpush1.msra.mxu0 0.0
  %1000 = vmatprep.subr.mxu0 0.0
  %1001 = vmatpush1.msra.mxu0 0.0
  %1002 = vmatprep.subr.mxu0 0.0
  %1003 = vmatpush1.msra.mxu0 0.0
  %1004 = vmatprep.subr.mxu0 0.0
  %1005 = vmatpush1.msra.mxu0 0.0
  %1006 = vmatprep.subr.mxu0 0.0
  %1007 = vmatpush1.msra.mxu0 0.0
  %1008 = vmatprep.subr.mxu0 0.0
  %1009 = vmatpush1.msra.mxu0 0.0
  %1010 = vmatprep.mubr.f32.mxu0 0.0
  %1011 = vmatmul.mubr.f32.gmra.mrb[0].mxu0 %v944
  %v1012 = vpop.f32.mrb[0].mxu0
  %v1013 = vadd.f32 0.0, %v1012
  %v1014 = vpop.f32.mrb[0].mxu0
  %1015 = vdwg.mxu0
  %v1016 = vadd.f32 %v943, %v1013
  %v1017 = vxor.u32 %v1016, 2147483648
  %v1018 = vmul.f32 %v1017, 1.442695
  %v1019 = vpow.pop %v1018
  %v1020 = vadd.f32 %v1019, 1.0
  %v1021 = vrcp.pop %v1020
  %v1022 = vmul.f32 1.0, %v1021
  %v1023 = vtanh.pop %v1016
  %v1024 = vmul.f32 %v1022, %v929
  %1026 = vrot.lane.b32.xlu0 %v1023, 32
  %v1027 = vpop.permute.xlu0 %1026
  %v1029 = vmul.f32 %v1022, %v1027
  %1031 = vrot.lane.b32.xlu0 %v1029, 32
  %v1032 = vpop.permute.xlu0 %1031
  %v1034 = vadd.f32 %v1024, %v1032
  %v1035 = vtanh.pop %v1034
  %1037 = vrot.lane.b32.xlu0 %v1035, 32
  %v1038 = vpop.permute.xlu0 %1037
  %v1040 = vmul.f32 %v1022, %v1038
  %1042 = vrot.lane.b32.xlu0 %v1040, 64
  %v1043 = vpop.permute.xlu0 %1042
  %s1045 = scalar_lea.vmem [#allocation3], 56
  %1046 = vst.msk [vmem:[%s1045] sm:$0xff] %vm204, %v1043
  %1047 = vst.msk [vmem:[%s11] sm:$0xff] %vm204, %v1043
  %1049 = vrot.lane.b32.xlu0 %v1034, 96
  %v1050 = vpop.permute.xlu0 %1049
  %1052 = vst.msk [vmem:[%s12] sm:$0xff] %vm204, %v1050
  %v1053 = vld [vmem:[#allocation3] sm:$0xff]
  %v1054 = vld [vmem:[#allocation3 + $0x8] sm:$0xff]
  %v1055 = vld [vmem:[#allocation3 + $0x10] sm:$0xff]
  %v1056 = vld [vmem:[#allocation3 + $0x18] sm:$0xff]
  %v1057 = vld [vmem:[#allocation3 + $0x20] sm:$0xff]
  %v1058 = vld [vmem:[#allocation3 + $0x28] sm:$0xff]
  %v1059 = vld [vmem:[#allocation3 + $0x30] sm:$0xff]
  %v1060 = vld [vmem:[#allocation3 + $0x38] sm:$0xff]
  %v1061 = vld [vmem:[%s6] sm:$0xff]
  %v1062 = vld [vmem:[%s6 + $0x8] sm:$0xff]
  %v1063 = vld [vmem:[%s6 + $0x10] sm:$0xff]
  %v1064 = vld [vmem:[%s6 + $0x18] sm:$0xff]
  %v1065 = vld [vmem:[%s7] sm:$0x1]
  %v1067 = vlaneseq
  %v1068 = vshrl.u32 %v1067, 7
  %v1069 = vsub.s32 0, %v1068
  %v1070 = vrot.slane %v1065, %v1069
  %v1073 = vsel %vm204, %v1053, 0
  %v1076 = vsel %vm204, %v1054, 0
  %v1079 = vsel %vm204, %v1055, 0
  %v1082 = vsel %vm204, %v1056, 0
  %v1085 = vsel %vm204, %v1057, 0
  %v1088 = vsel %vm204, %v1058, 0
  %v1091 = vsel %vm204, %v1059, 0
  %v1094 = vsel %vm204, %v1060, 0
  %1096 = vmatprep.subr.mxu0 0.0
  %1097 = vmatpush1.msra.mxu0 %v1061
  %1098 = vmatprep.subr.mxu0 0.0
  %1099 = vmatpush1.msra.mxu0 %v1062
  %1100 = vmatprep.subr.mxu0 0.0
  %1101 = vmatpush1.msra.mxu0 %v1063
  %1102 = vmatprep.subr.mxu0 0.0
  %1103 = vmatpush1.msra.mxu0 %v1064
  %1104 = vmatprep.subr.mxu0 0.0
  %1105 = vmatpush1.msra.mxu0 0.0
  %1106 = vmatprep.subr.mxu0 0.0
  %1107 = vmatpush1.msra.mxu0 0.0
  %1108 = vmatprep.subr.mxu0 0.0
  %1109 = vmatpush1.msra.mxu0 0.0
  %1110 = vmatprep.subr.mxu0 0.0
  %1111 = vmatpush1.msra.mxu0 0.0
  %1112 = vmatprep.subr.mxu0 0.0
  %1113 = vmatpush1.msra.mxu0 0.0
  %1114 = vmatprep.subr.mxu0 0.0
  %1115 = vmatpush1.msra.mxu0 0.0
  %1116 = vmatprep.subr.mxu0 0.0
  %1117 = vmatpush1.msra.mxu0 0.0
  %1118 = vmatprep.subr.mxu0 0.0
  %1119 = vmatpush1.msra.mxu0 0.0
  %1120 = vmatprep.subr.mxu0 0.0
  %1121 = vmatpush1.msra.mxu0 0.0
  %1122 = vmatprep.subr.mxu0 0.0
  %1123 = vmatpush1.msra.mxu0 0.0
  %1124 = vmatprep.subr.mxu0 0.0
  %1125 = vmatpush1.msra.mxu0 0.0
  %1126 = vmatprep.subr.mxu0 0.0
  %1127 = vmatpush1.msra.mxu0 0.0
  %1128 = vmatprep.subr.mxu0 0.0
  %1129 = vmatpush1.msra.mxu0 0.0
  %1130 = vmatprep.subr.mxu0 0.0
  %1131 = vmatpush1.msra.mxu0 0.0
  %1132 = vmatprep.subr.mxu0 0.0
  %1133 = vmatpush1.msra.mxu0 0.0
  %1134 = vmatprep.subr.mxu0 0.0
  %1135 = vmatpush1.msra.mxu0 0.0
  %1136 = vmatprep.subr.mxu0 0.0
  %1137 = vmatpush1.msra.mxu0 0.0
  %1138 = vmatprep.subr.mxu0 0.0
  %1139 = vmatpush1.msra.mxu0 0.0
  %1140 = vmatprep.subr.mxu0 0.0
  %1141 = vmatpush1.msra.mxu0 0.0
  %1142 = vmatprep.subr.mxu0 0.0
  %1143 = vmatpush1.msra.mxu0 0.0
  %1144 = vmatprep.subr.mxu0 0.0
  %1145 = vmatpush1.msra.mxu0 0.0
  %1146 = vmatprep.subr.mxu0 0.0
  %1147 = vmatpush1.msra.mxu0 0.0
  %1148 = vmatprep.subr.mxu0 0.0
  %1149 = vmatpush1.msra.mxu0 0.0
  %1150 = vmatprep.subr.mxu0 0.0
  %1151 = vmatpush1.msra.mxu0 0.0
  %1152 = vmatprep.subr.mxu0 0.0
  %1153 = vmatpush1.msra.mxu0 0.0
  %1154 = vmatprep.subr.mxu0 0.0
  %1155 = vmatpush1.msra.mxu0 0.0
  %1156 = vmatprep.subr.mxu0 0.0
  %1157 = vmatpush1.msra.mxu0 0.0
  %1158 = vmatprep.subr.mxu0 0.0
  %1159 = vmatpush1.msra.mxu0 0.0
  %1160 = vmatprep.mubr.f32.mxu0 0.0
  %1161 = vmatmul.mubr.f32.gmra.mrb[0].mxu0 %v1073
  %v1162 = vpop.f32.mrb[0].mxu0
  %v1163 = vadd.f32 %v1070, %v1162
  %v1164 = vpop.f32.mrb[0].mxu0
  %1165 = vmatprep.mubr.f32.mxu0 0.0
  %1166 = vmatmul.mubr.f32.gmra.mrb[0].mxu0 %v1076
  %v1167 = vpop.f32.mrb[0].mxu0
  %v1168 = vadd.f32 %v1070, %v1167
  %v1169 = vpop.f32.mrb[0].mxu0
  %1170 = vmatprep.mubr.f32.mxu0 0.0
  %1171 = vmatmul.mubr.f32.gmra.mrb[0].mxu0 %v1079
  %v1172 = vpop.f32.mrb[0].mxu0
  %v1173 = vadd.f32 %v1070, %v1172
  %v1174 = vpop.f32.mrb[0].mxu0
  %1175 = vmatprep.mubr.f32.mxu0 0.0
  %1176 = vmatmul.mubr.f32.gmra.mrb[0].mxu0 %v1082
  %v1177 = vpop.f32.mrb[0].mxu0
  %v1178 = vadd.f32 %v1070, %v1177
  %v1179 = vpop.f32.mrb[0].mxu0
  %1180 = vmatprep.mubr.f32.mxu0 0.0
  %1181 = vmatmul.mubr.f32.gmra.mrb[0].mxu0 %v1085
  %v1182 = vpop.f32.mrb[0].mxu0
  %v1183 = vadd.f32 %v1070, %v1182
  %v1184 = vpop.f32.mrb[0].mxu0
  %1185 = vmatprep.mubr.f32.mxu0 0.0
  %1186 = vmatmul.mubr.f32.gmra.mrb[0].mxu0 %v1088
  %v1187 = vpop.f32.mrb[0].mxu0
  %v1188 = vadd.f32 %v1070, %v1187
  %v1189 = vpop.f32.mrb[0].mxu0
  %1190 = vmatprep.mubr.f32.mxu0 0.0
  %1191 = vmatmul.mubr.f32.gmra.mrb[0].mxu0 %v1091
  %v1192 = vpop.f32.mrb[0].mxu0
  %v1193 = vadd.f32 %v1070, %v1192
  %v1194 = vpop.f32.mrb[0].mxu0
  %1195 = vmatprep.mubr.f32.mxu0 0.0
  %1196 = vmatmul.mubr.f32.gmra.mrb[0].mxu0 %v1094
  %v1197 = vpop.f32.mrb[0].mxu0
  %v1198 = vadd.f32 %v1070, %v1197
  %v1199 = vpop.f32.mrb[0].mxu0
  %1200 = vdwg.mxu0
  %v1201 = vmax.f32 %v1163, 0.0
  %v1202 = vmax.f32 %v1168, 0.0
  %v1203 = vmax.f32 %v1173, 0.0
  %v1204 = vmax.f32 %v1178, 0.0
  %v1205 = vmax.f32 %v1183, 0.0
  %v1206 = vmax.f32 %v1188, 0.0
  %v1207 = vmax.f32 %v1193, 0.0
  %v1208 = vmax.f32 %v1198, 0.0
  %v1209 = vld [vmem:[%s8] sm:$0xff]
  %v1210 = vld [vmem:[%s8 + $0x8] sm:$0xff]
  %v1211 = vld [vmem:[%s8 + $0x10] sm:$0xff]
  %v1212 = vld [vmem:[%s8 + $0x18] sm:$0xff]
  %v1213 = vld [vmem:[%s9] sm:$0x1]
  %v1215 = vlaneseq
  %v1216 = vshrl.u32 %v1215, 7
  %v1217 = vsub.s32 0, %v1216
  %v1218 = vrot.slane %v1213, %v1217
  %v1221 = vsel %vm204, %v1201, 0
  %v1224 = vsel %vm204, %v1202, 0
  %v1227 = vsel %vm204, %v1203, 0
  %v1230 = vsel %vm204, %v1204, 0
  %v1233 = vsel %vm204, %v1205, 0
  %v1236 = vsel %vm204, %v1206, 0
  %v1239 = vsel %vm204, %v1207, 0
  %v1242 = vsel %vm204, %v1208, 0
  %1244 = vmatprep.subr.mxu0 0.0
  %1245 = vmatpush1.msra.mxu0 %v1209
  %1246 = vmatprep.subr.mxu0 0.0
  %1247 = vmatpush1.msra.mxu0 %v1210
  %1248 = vmatprep.subr.mxu0 0.0
  %1249 = vmatpush1.msra.mxu0 %v1211
  %1250 = vmatprep.subr.mxu0 0.0
  %1251 = vmatpush1.msra.mxu0 %v1212
  %1252 = vmatprep.subr.mxu0 0.0
  %1253 = vmatpush1.msra.mxu0 0.0
  %1254 = vmatprep.subr.mxu0 0.0
  %1255 = vmatpush1.msra.mxu0 0.0
  %1256 = vmatprep.subr.mxu0 0.0
  %1257 = vmatpush1.msra.mxu0 0.0
  %1258 = vmatprep.subr.mxu0 0.0
  %1259 = vmatpush1.msra.mxu0 0.0
  %1260 = vmatprep.subr.mxu0 0.0
  %1261 = vmatpush1.msra.mxu0 0.0
  %1262 = vmatprep.subr.mxu0 0.0
  %1263 = vmatpush1.msra.mxu0 0.0
  %1264 = vmatprep.subr.mxu0 0.0
  %1265 = vmatpush1.msra.mxu0 0.0
  %1266 = vmatprep.subr.mxu0 0.0
  %1267 = vmatpush1.msra.mxu0 0.0
  %1268 = vmatprep.subr.mxu0 0.0
  %1269 = vmatpush1.msra.mxu0 0.0
  %1270 = vmatprep.subr.mxu0 0.0
  %1271 = vmatpush1.msra.mxu0 0.0
  %1272 = vmatprep.subr.mxu0 0.0
  %1273 = vmatpush1.msra.mxu0 0.0
  %1274 = vmatprep.subr.mxu0 0.0
  %1275 = vmatpush1.msra.mxu0 0.0
  %1276 = vmatprep.subr.mxu0 0.0
  %1277 = vmatpush1.msra.mxu0 0.0
  %1278 = vmatprep.subr.mxu0 0.0
  %1279 = vmatpush1.msra.mxu0 0.0
  %1280 = vmatprep.subr.mxu0 0.0
  %1281 = vmatpush1.msra.mxu0 0.0
  %1282 = vmatprep.subr.mxu0 0.0
  %1283 = vmatpush1.msra.mxu0 0.0
  %1284 = vmatprep.subr.mxu0 0.0
  %1285 = vmatpush1.msra.mxu0 0.0
  %1286 = vmatprep.subr.mxu0 0.0
  %1287 = vmatpush1.msra.mxu0 0.0
  %1288 = vmatprep.subr.mxu0 0.0
  %1289 = vmatpush1.msra.mxu0 0.0
  %1290 = vmatprep.subr.mxu0 0.0
  %1291 = vmatpush1.msra.mxu0 0.0
  %1292 = vmatprep.subr.mxu0 0.0
  %1293 = vmatpush1.msra.mxu0 0.0
  %1294 = vmatprep.subr.mxu0 0.0
  %1295 = vmatpush1.msra.mxu0 0.0
  %1296 = vmatprep.subr.mxu0 0.0
  %1297 = vmatpush1.msra.mxu0 0.0
  %1298 = vmatprep.subr.mxu0 0.0
  %1299 = vmatpush1.msra.mxu0 0.0
  %1300 = vmatprep.subr.mxu0 0.0
  %1301 = vmatpush1.msra.mxu0 0.0
  %1302 = vmatprep.subr.mxu0 0.0
  %1303 = vmatpush1.msra.mxu0 0.0
  %1304 = vmatprep.subr.mxu0 0.0
  %1305 = vmatpush1.msra.mxu0 0.0
  %1306 = vmatprep.subr.mxu0 0.0
  %1307 = vmatpush1.msra.mxu0 0.0
  %1308 = vmatprep.mubr.f32.mxu0 0.0
  %1309 = vmatmul.mubr.f32.gmra.mrb[0].mxu0 %v1221
  %v1310 = vpop.f32.mrb[0].mxu0
  %v1311 = vadd.f32 %v1218, %v1310
  %v1312 = vpop.f32.mrb[0].mxu0
  %1313 = vmatprep.mubr.f32.mxu0 0.0
  %1314 = vmatmul.mubr.f32.gmra.mrb[0].mxu0 %v1224
  %v1315 = vpop.f32.mrb[0].mxu0
  %v1316 = vadd.f32 %v1218, %v1315
  %v1317 = vpop.f32.mrb[0].mxu0
  %1318 = vmatprep.mubr.f32.mxu0 0.0
  %1319 = vmatmul.mubr.f32.gmra.mrb[0].mxu0 %v1227
  %v1320 = vpop.f32.mrb[0].mxu0
  %v1321 = vadd.f32 %v1218, %v1320
  %v1322 = vpop.f32.mrb[0].mxu0
  %1323 = vmatprep.mubr.f32.mxu0 0.0
  %1324 = vmatmul.mubr.f32.gmra.mrb[0].mxu0 %v1230
  %v1325 = vpop.f32.mrb[0].mxu0
  %v1326 = vadd.f32 %v1218, %v1325
  %v1327 = vpop.f32.mrb[0].mxu0
  %1328 = vmatprep.mubr.f32.mxu0 0.0
  %1329 = vmatmul.mubr.f32.gmra.mrb[0].mxu0 %v1233
  %v1330 = vpop.f32.mrb[0].mxu0
  %v1331 = vadd.f32 %v1218, %v1330
  %v1332 = vpop.f32.mrb[0].mxu0
  %1333 = vmatprep.mubr.f32.mxu0 0.0
  %1334 = vmatmul.mubr.f32.gmra.mrb[0].mxu0 %v1236
  %v1335 = vpop.f32.mrb[0].mxu0
  %v1336 = vadd.f32 %v1218, %v1335
  %v1337 = vpop.f32.mrb[0].mxu0
  %1338 = vmatprep.mubr.f32.mxu0 0.0
  %1339 = vmatmul.mubr.f32.gmra.mrb[0].mxu0 %v1239
  %v1340 = vpop.f32.mrb[0].mxu0
  %v1341 = vadd.f32 %v1218, %v1340
  %v1342 = vpop.f32.mrb[0].mxu0
  %1343 = vmatprep.mubr.f32.mxu0 0.0
  %1344 = vmatmul.mubr.f32.gmra.mrb[0].mxu0 %v1242
  %v1345 = vpop.f32.mrb[0].mxu0
  %v1346 = vadd.f32 %v1218, %v1345
  %v1347 = vpop.f32.mrb[0].mxu0
  %1348 = vdwg.mxu0
  %vm1349 = vcmask 31744
  %1350 = vst.msk [vmem:[%s10] sm:$0xff] %vm1349, %v1311
  %1351 = vst.msk [vmem:[%s10 + $0x8] sm:$0xff] %vm1349, %v1316
  %1352 = vst.msk [vmem:[%s10 + $0x10] sm:$0xff] %vm1349, %v1321
  %1353 = vst.msk [vmem:[%s10 + $0x18] sm:$0xff] %vm1349, %v1326
  %1354 = vst.msk [vmem:[%s10 + $0x20] sm:$0xff] %vm1349, %v1331
  %1355 = vst.msk [vmem:[%s10 + $0x28] sm:$0xff] %vm1349, %v1336
  %1356 = vst.msk [vmem:[%s10 + $0x30] sm:$0xff] %vm1349, %v1341
  %1357 = vst.msk [vmem:[%s10 + $0x38] sm:$0xff] %vm1349, %v1346
  // Predicated region
  $region42: #{ddrqn_forward.1} parent=0 // pred_check
    _
  $region43: #{ddrqn_forward.1} parent=0 // pred_check_branch
    %1359 = sbr.rel (0) target = $region45
  $region44: #{ddrqn_forward.1} parent=0 // pred_region
    _
  $region45: #{ddrqn_forward.1} parent=0 // pred_fallthru
    _
  // Predicated region
  $region46: #{ddrqn_forward.1} parent=0 // pred_check
    _
  $region47: #{ddrqn_forward.1} parent=0 // pred_check_branch
    %1361 = sbr.rel (0) target = $region49
  $region48: #{ddrqn_forward.1} parent=0 // pred_region
    _
  $region49: #{ddrqn_forward.1} parent=0 // pred_fallthru
    _
  // Predicated region
  $region50: #{ddrqn_forward.1} parent=0 // pred_check
    _
  $region51: #{ddrqn_forward.1} parent=0 // pred_check_branch
    %1363 = sbr.rel (0) target = $region53
  $region52: #{ddrqn_forward.1} parent=0 // pred_region
    _
  $region53: #{ddrqn_forward.1} parent=0 // pred_fallthru
    _
  // Predicated region
  $region54: #{ddrqn_forward.1} parent=0 // pred_check
    _
  $region55: #{ddrqn_forward.1} parent=0 // pred_check_branch
    %1365 = sbr.rel (0) target = $region57
  $region56: #{ddrqn_forward.1} parent=0 // pred_region
    _
  $region57: #{ddrqn_forward.1} parent=0 // pred_fallthru
    _
  // Predicated region
  $region58: #{ddrqn_forward.1} parent=0 // pred_check
    _
  $region59: #{ddrqn_forward.1} parent=0 // pred_check_branch
    %1367 = sbr.rel (0) target = $region61
  $region60: #{ddrqn_forward.1} parent=0 // pred_region
    _
  $region61: #{ddrqn_forward.1} parent=0 // pred_fallthru
    _
  // Predicated region
  $region62: #{ddrqn_forward.1} parent=0 // pred_check
    _
  $region63: #{ddrqn_forward.1} parent=0 // pred_check_branch
    %1369 = sbr.rel (0) target = $region65
  $region64: #{ddrqn_forward.1} parent=0 // pred_region
    _
  $region65: #{ddrqn_forward.1} parent=0 // pred_fallthru
    _

</llo_original>
